<compile_context>
chip_gen: v7x
topology: tpu7x:2x2x1
jax: 0.10.0
libtpu: 0.0.40
codegen_flags: <defaults>
</compile_context>

<pallas_src>
import jax
import jax.numpy as jnp
from jax import lax
from jax.experimental import pallas as pl
from jax.experimental.pallas import tpu as pltpu


def _round_up(v: int, m: int) -> int:
    return (v + m - 1) // m * m


def _conv_matmul_bias_relu_kernel(a_ref, w_ref, b_ref, o_ref):
    # a_ref: (tm, K)   bf16 patches
    # w_ref: (K, tn)   bf16 reshaped conv weight
    # b_ref: (1, tn)   f32 bias
    # o_ref: (tm, tn)  bf16 = relu(a @ w + b)   (bf16 store halves HBM writeback)
    acc = jnp.dot(a_ref[...], w_ref[...], preferred_element_type=jnp.float32)
    acc = acc + b_ref[...]
    o_ref[...] = jnp.maximum(acc, 0.0).astype(o_ref.dtype)


def _tpu_config():
    """Per-generation tiling knobs: (two_tensorcores, vmem_budget_bytes, tm_max)."""
    kind = ""
    try:
        kind = jax.devices()[0].device_kind.lower()
    except Exception:
        pass

    if "v7" in kind or "7x" in kind:
        two_tc, vmem_cap, tm_max = True, 64 << 20, 512      # 2 TC, 64 MiB VMEM
    elif "v6" in kind:
        two_tc, vmem_cap, tm_max = False, 128 << 20, 1024   # 1 TC, 128 MiB VMEM
    elif "v5e" in kind or "v5 lite" in kind or "v5lite" in kind:
        two_tc, vmem_cap, tm_max = False, 128 << 20, 1024   # 1 TC, 128 MiB VMEM
    else:
        two_tc, vmem_cap, tm_max = False, 64 << 20, 512     # conservative default

    try:  # prefer the real number when available
        cap = int(pltpu.get_tpu_info().vmem_capacity_bytes)
        if cap > 0:
            vmem_cap = cap
    except Exception:
        pass

    # leave half of physical VMEM as headroom for compiler scratch etc.
    return two_tc, vmem_cap // 2, tm_max


def _plan_tiles(M, K, Cout, *, two_tc, vmem_budget, tm_max):
    """Pick (tm, M_pad, grid_m, tn, Cout_pad, grid_n, vmem_needed)."""

    def vmem_est(tm, tn):
        # double-buffered: bf16 patches, bf16 weight, f32 bias, bf16 output tile
        return (2 * tm * K * 2) + (2 * K * tn * 2) + (2 * tn * 4) + (2 * tm * tn * 2)

    cout128 = _round_up(Cout, 128)

    # M tile: as large as possible (MXU-aligned); pad M instead of asserting.
    tm = min(tm_max, _round_up(M, 128))
    M_pad = _round_up(M, tm)
    grid_m = M_pad // tm

    # v7x (2 TensorCores): if there is only one row block, split the Cout axis
    # (both cores keep >=128-row, lane-dense matmuls) instead of halving tm.
    # Single-TC v5e/v6e: never split just for "parallelism".
    min_splits = 2 if (two_tc and grid_m == 1 and cout128 >= 256) else 1

    tn, grid_n = None, None
    for g in range(min_splits, cout128 // 128 + 1):
        cand = _round_up(-(-Cout // g), 128)       # minimal lane-dense tile for g blocks
        if vmem_est(tm, cand) <= vmem_budget:
            tn, grid_n = cand, g
            break
    if tn is None:
        # extreme fallback: smallest lane-dense column tile, shrink tm as well
        tn = 128
        grid_n = cout128 // 128
        while tm > 128 and vmem_est(tm, tn) > vmem_budget:
            tm //= 2
        M_pad = _round_up(M, tm)
        grid_m = M_pad // tm

    Cout_pad = grid_n * tn
    return tm, M_pad, grid_m, tn, Cout_pad, grid_n, vmem_est(tm, tn)


def upsampler_forward(x, weight, bias):
    """x: (N, C, H, W) f32 (NCHW).  weight: (25*C, C, 2, 2).  bias: (25*C,).

    Returns (N, C, 5*H//2, 5*W//2) f32, matching
    relu(pixel_shuffle5(conv2d(x, weight, bias, stride=2)))."""
    N, C, H, W = x.shape
    Cout = weight.shape[0]            # 25 * C
    assert H % 2 == 0 and W % 2 == 0
    Ho, Wo = H // 2, W // 2
    K = C * 4
    r = 5
    M = N * Ho * Wo

    two_tc, vmem_budget, tm_max = _tpu_config()
    tm, M_pad, grid_m, tn, Cout_pad, grid_n, vmem_needed = _plan_tiles(
        M, K, Cout, two_tc=two_tc, vmem_budget=vmem_budget, tm_max=tm_max)

    # ---- glue: space-to-depth (patch extraction) + bf16 cast ------------------
    # One XLA transpose of the *small* input tensor; the bf16 cast fuses into it.
    patches = x.reshape(N, C, Ho, 2, Wo, 2)
    patches = patches.transpose(0, 2, 4, 1, 3, 5).reshape(M, K)   # (c, di, dj) order
    patches = patches.astype(jnp.bfloat16)
    if M_pad != M:
        patches = jnp.pad(patches, ((0, M_pad - M), (0, 0)))

    w2d = weight.reshape(Cout, K).T.astype(jnp.bfloat16)          # (K, Cout)
    b2d = bias.astype(jnp.float32).reshape(1, Cout)
    if Cout_pad != Cout:
        w2d = jnp.pad(w2d, ((0, 0), (0, Cout_pad - Cout)))
        b2d = jnp.pad(b2d, ((0, 0), (0, Cout_pad - Cout)))

    # ---- grid order: keep the bigger re-fetched operand resident --------------
    bytes_m_outer = M_pad * K * 2 + grid_m * (K * Cout_pad * 2)   # weight re-fetched / row block
    bytes_n_outer = K * Cout_pad * 2 + grid_n * (M_pad * K * 2)   # patches re-fetched / col block
    n_outer = (grid_n > 1) and (grid_m > 1) and (bytes_n_outer < bytes_m_outer)

    if n_outer:
        grid = (grid_n, grid_m)
        a_spec = pl.BlockSpec((tm, K), lambda j, i: (i, 0))
        w_spec = pl.BlockSpec((K, tn), lambda j, i: (0, j))
        b_spec = pl.BlockSpec((1, tn), lambda j, i: (0, j))
        o_spec = pl.BlockSpec((tm, tn), lambda j, i: (i, j))
    else:
        grid = (grid_m, grid_n)
        a_spec = pl.BlockSpec((tm, K), lambda i, j: (i, 0))
        w_spec = pl.BlockSpec((K, tn), lambda i, j: (0, j))
        b_spec = pl.BlockSpec((1, tn), lambda i, j: (0, j))
        o_spec = pl.BlockSpec((tm, tn), lambda i, j: (i, j))

    flops = 2 * M_pad * K * Cout_pad
    bytes_accessed = (M_pad * K * 2) + (K * Cout_pad * 2) + (Cout_pad * 4) \
        + (M_pad * Cout_pad * 2)
    vmem_limit = int(min(vmem_budget, max(32 << 20, 2 * vmem_needed)))

    out_mat = pl.pallas_call(
        _conv_matmul_bias_relu_kernel,
        out_shape=jax.ShapeDtypeStruct((M_pad, Cout_pad), jnp.bfloat16),
        grid_spec=pl.GridSpec(
            grid=grid,
            in_specs=[a_spec, w_spec, b_spec],
            out_specs=o_spec),
        compiler_params=pltpu.CompilerParams(
            dimension_semantics=("parallel", "parallel"),
            vmem_limit_bytes=vmem_limit),
        cost_estimate=pl.CostEstimate(
            flops=flops, transcendentals=0, bytes_accessed=bytes_accessed),
    )(patches, w2d, b2d)

    # ---- glue: single post-permutation = un-pad + PixelShuffle(5) -------------
    # Rows of out_mat are (n, ho, wo); cols are (c, ri, rj).  One bf16 transpose
    # (half the HBM traffic of the previous f32 version) takes it straight to
    # the shuffled NCHW layout; cast back to f32 only at the very end.
    y = out_mat[:M, :Cout].reshape(N, Ho, Wo, C, r, r)
    y = y.transpose(0, 3, 1, 4, 2, 5)              # (N, C, Ho, r, Wo, r)
    y = y.reshape(N, C, Ho * r, Wo * r)
    return y.astype(jnp.float32)


def _reference_forward(x, weight, bias):
    """Independent f32 reference: lax.conv + pixel shuffle + relu."""
    conv = lax.conv_general_dilated(
        x, weight, window_strides=(2, 2), padding="VALID",
        dimension_numbers=("NCHW", "OIHW", "NCHW"))
    conv = conv + bias.reshape(1, -1, 1, 1)
    N, CO, Ho, Wo = conv.shape
    r = 5
    C = CO // (r * r)
    y = conv.reshape(N, C, r, r, Ho, Wo).transpose(0, 1, 4, 2, 5, 3)
    y = y.reshape(N, C, Ho * r, Wo * r)
    return jnp.maximum(y, 0.0)


if __name__ == "__main__":
    n_feats = 64
    N, H, W = 2, 16, 16

    key = jax.random.PRNGKey(0)
    kx, kw, kb = jax.random.split(key, 3)

    x = jax.random.normal(kx, (N, n_feats, H, W), dtype=jnp.float32)
    # deterministic, synthetic Conv2d(n_feats, 25*n_feats, 2, stride=2) params
    fan_in = n_feats * 2 * 2
    weight = jax.random.normal(kw, (25 * n_feats, n_feats, 2, 2),
                               dtype=jnp.float32) * (1.0 / jnp.sqrt(fan_in))
    bias = jax.random.normal(kb, (25 * n_feats,), dtype=jnp.float32) * 0.1

    fwd = jax.jit(upsampler_forward)
    y = jax.block_until_ready(fwd(x, weight, bias))

    y_ref = _reference_forward(x, weight, bias)
    assert y.shape == (N, n_feats, 5 * H // 2, 5 * W // 2), y.shape
    # bf16 matmul inputs + bf16-stored intermediate (f32 MXU accumulation)
    # => a few 1e-2 absolute error vs. the pure-f32 reference.
    max_err = float(jnp.max(jnp.abs(y - y_ref)))
    assert max_err < 7.5e-2, f"mismatch vs reference: max_err={max_err}"

    print("KERNEL_OK")
</pallas_src>

<mosaic_0001>
module attributes {stable_mosaic.version = 11 : i64} {
  func.func @_conv_matmul_bias_relu_kernel(%arg0: i32, %arg1: i32, %arg2: memref<128x256xbf16, #tpu.memory_space<vmem>>, %arg3: memref<256x1664xbf16, #tpu.memory_space<vmem>>, %arg4: memref<1x1664xf32, #tpu.memory_space<vmem>>, %arg5: memref<128x1664xbf16, #tpu.memory_space<vmem>>) attributes {dimension_semantics = [#tpu.dimension_semantics<parallel>, #tpu.dimension_semantics<parallel>], iteration_bounds = array<i64: 1, 1>, scalar_prefetch = 0 : i64, scratch_operands = 0 : i64, tpu.core_type = #tpu.core_type<tc>, window_params = [{transform_indices = @transform_0, window_bounds = array<i64: 128, 256>}, {transform_indices = @transform_1, window_bounds = array<i64: 256, 1664>}, {transform_indices = @transform_2, window_bounds = array<i64: 1, 1664>}, {transform_indices = @transform_3, window_bounds = array<i64: 128, 1664>}]} {
    %c0 = arith.constant 0 : index
    %c0_0 = arith.constant 0 : index
    %0 = vector.load %arg2[%c0, %c0_0] : memref<128x256xbf16, #tpu.memory_space<vmem>>, vector<128x256xbf16>
    %c0_1 = arith.constant 0 : index
    %c0_2 = arith.constant 0 : index
    %1 = vector.load %arg3[%c0_1, %c0_2] : memref<256x1664xbf16, #tpu.memory_space<vmem>>, vector<256x1664xbf16>
    %cst = arith.constant dense<0.000000e+00> : vector<128x1664xf32>
    %2 = tpu.matmul %0, %1, %cst {dimension_numbers = #tpu.dot_dimension_numbers<[1], [0], [0], [1], [0, 0, 1, 1], [], []>} : vector<128x256xbf16>, vector<256x1664xbf16>, vector<128x1664xf32> -> vector<128x1664xf32>
    %c0_3 = arith.constant 0 : index
    %c0_4 = arith.constant 0 : index
    %3 = vector.load %arg4[%c0_3, %c0_4] : memref<1x1664xf32, #tpu.memory_space<vmem>>, vector<1x1664xf32>
    %4 = vector.broadcast %3 : vector<1x1664xf32> to vector<128x1664xf32>
    %5 = arith.addf %2, %4 : vector<128x1664xf32>
    %cst_5 = arith.constant 0.000000e+00 : f32
    %6 = vector.broadcast %cst_5 : f32 to vector<128x1664xf32>
    %7 = arith.maximumf %5, %6 : vector<128x1664xf32>
    %8 = arith.truncf %7 : vector<128x1664xf32> to vector<128x1664xbf16>
    %c0_6 = arith.constant 0 : index
    %c0_7 = arith.constant 0 : index
    %9 = vector.load %arg5[%c0_6, %c0_7] : memref<128x1664xbf16, #tpu.memory_space<vmem>>, vector<128x1664xbf16>
    tpu.vector_store %arg5[%c0_6, %c0_7], %8 {strides = array<i32>} : memref<128x1664xbf16, #tpu.memory_space<vmem>>, vector<128x1664xbf16>,
    return
  }
  func.func @transform_0(%arg0: i32, %arg1: i32) -> (i32, i32) {
    %c0_i32 = arith.constant 0 : i32
    %c0_i32_0 = arith.constant 0 : i32
    return %arg0, %c0_i32 : i32, i32
  }
  func.func @transform_1(%arg0: i32, %arg1: i32) -> (i32, i32) {
    %c0_i32 = arith.constant 0 : i32
    %c0_i32_0 = arith.constant 0 : i32
    return %c0_i32, %arg1 : i32, i32
  }
  func.func @transform_2(%arg0: i32, %arg1: i32) -> (i32, i32) {
    %c0_i32 = arith.constant 0 : i32
    %c0_i32_0 = arith.constant 0 : i32
    return %c0_i32, %arg1 : i32, i32
  }
  func.func @transform_3(%arg0: i32, %arg1: i32) -> (i32, i32) {
    %c0_i32 = arith.constant 0 : i32
    return %arg0, %arg1 : i32, i32
  }
}

</mosaic_0001>

<llo_original>
// kernel: upsampler_forward.1
$region0: #{upsampler_forward.1}
  #allocation0 [shape = 'u32[]', space=smem, size = 0x4, offset = 0x4, fixed_abs, tag = 'smem constant byte address 0x4 - core index']
  #allocation1 [shape = 'u32[144,128]{1,0:T(1,128)}', space=vmem, size = 0x12000, scoped, tag = 'internal scratch']
  %s0 = inlined_call_operand.vmem [shape: bf16[128,256], index: 0, kind: input, shape index: {}]
  %s1 = inlined_call_operand.vmem [shape: bf16[256,1664], index: 1, kind: input, shape index: {}]
  %s2 = inlined_call_operand.vmem [shape: f32[1,1664], index: 2, kind: input, shape index: {}]
  %s3 = inlined_call_operand.vmem [shape: bf16[128,1664], index: 3, kind: output, shape index: {}]
  %s4 = sld [smem:[#allocation0]]
  $region22: #{upsampler_forward.1} parent=0
    _
  %s6 = ssub.s32 1, %s4
  %s7 = scalar_select 0, %s6, %s4
  // Predicated region
  $region2: #{upsampler_forward.1} parent=0 // pred_check
    _
  $region3: #{upsampler_forward.1} parent=0 // pred_check_branch
    %9 = sbr.rel (0) target = $region5
  $region4: #{upsampler_forward.1} parent=0 // pred_region
    _
  $region5: #{upsampler_forward.1} parent=0 // pred_fallthru
    _
  // Predicated region
  $region6: #{upsampler_forward.1} parent=0 // pred_check
    _
  $region7: #{upsampler_forward.1} parent=0 // pred_check_branch
    %11 = sbr.rel (0) target = $region9
  $region8: #{upsampler_forward.1} parent=0 // pred_region
    _
  $region9: #{upsampler_forward.1} parent=0 // pred_fallthru
    _
  // Predicated region
  $region10: #{upsampler_forward.1} parent=0 // pred_check
    _
  $region11: #{upsampler_forward.1} parent=0 // pred_check_branch
    %13 = sbr.rel (0) target = $region13
  $region12: #{upsampler_forward.1} parent=0 // pred_region
    _
  $region13: #{upsampler_forward.1} parent=0 // pred_fallthru
    _
  %v15 = vld [vmem:[%s0] sm:$0xff]
  %v16 = vld [vmem:[%s0 + $0x8] sm:$0xff]
  %v17 = vld [vmem:[%s0 + $0x10] sm:$0xff]
  %v18 = vld [vmem:[%s0 + $0x18] sm:$0xff]
  %v19 = vld [vmem:[%s0 + $0x20] sm:$0xff]
  %v20 = vld [vmem:[%s0 + $0x28] sm:$0xff]
  %v21 = vld [vmem:[%s0 + $0x30] sm:$0xff]
  %v22 = vld [vmem:[%s0 + $0x38] sm:$0xff]
  %v23 = vld [vmem:[%s0 + $0x40] sm:$0xff]
  %v24 = vld [vmem:[%s0 + $0x48] sm:$0xff]
  %v25 = vld [vmem:[%s0 + $0x50] sm:$0xff]
  %v26 = vld [vmem:[%s0 + $0x58] sm:$0xff]
  %v27 = vld [vmem:[%s0 + $0x60] sm:$0xff]
  %v28 = vld [vmem:[%s0 + $0x68] sm:$0xff]
  %v29 = vld [vmem:[%s0 + $0x70] sm:$0xff]
  %v30 = vld [vmem:[%s0 + $0x78] sm:$0xff]
  %v31 = vld [vmem:[%s1] sm:$0xff]
  %v32 = vld [vmem:[%s1 + $0x8] sm:$0xff]
  %v33 = vld [vmem:[%s1 + $0x10] sm:$0xff]
  %v34 = vld [vmem:[%s1 + $0x18] sm:$0xff]
  %v35 = vld [vmem:[%s1 + $0x20] sm:$0xff]
  %v36 = vld [vmem:[%s1 + $0x28] sm:$0xff]
  %v37 = vld [vmem:[%s1 + $0x30] sm:$0xf]
  %v38 = vld [vmem:[%s1 + $0x34] sm:$0xff]
  %v39 = vld [vmem:[%s1 + $0x3c] sm:$0xff]
  %v40 = vld [vmem:[%s1 + $0x44] sm:$0xff]
  %v41 = vld [vmem:[%s1 + $0x4c] sm:$0xff]
  %v42 = vld [vmem:[%s1 + $0x54] sm:$0xff]
  %v43 = vld [vmem:[%s1 + $0x5c] sm:$0xff]
  %v44 = vld [vmem:[%s1 + $0x64] sm:$0xf]
  %v45 = vld [vmem:[%s1 + $0x68] sm:$0xff]
  %v46 = vld [vmem:[%s1 + $0x70] sm:$0xff]
  %v47 = vld [vmem:[%s1 + $0x78] sm:$0xff]
  %v48 = vld [vmem:[%s1 + $0x80] sm:$0xff]
  %v49 = vld [vmem:[%s1 + $0x88] sm:$0xff]
  %v50 = vld [vmem:[%s1 + $0x90] sm:$0xff]
  %v51 = vld [vmem:[%s1 + $0x98] sm:$0xf]
  %v52 = vld [vmem:[%s1 + $0x9c] sm:$0xff]
  %v53 = vld [vmem:[%s1 + $0xa4] sm:$0xff]
  %v54 = vld [vmem:[%s1 + $0xac] sm:$0xff]
  %v55 = vld [vmem:[%s1 + $0xb4] sm:$0xff]
  %v56 = vld [vmem:[%s1 + $0xbc] sm:$0xff]
  %v57 = vld [vmem:[%s1 + $0xc4] sm:$0xff]
  %v58 = vld [vmem:[%s1 + $0xcc] sm:$0xf]
  %v59 = vld [vmem:[%s1 + $0xd0] sm:$0xff]
  %v60 = vld [vmem:[%s1 + $0xd8] sm:$0xff]
  %v61 = vld [vmem:[%s1 + $0xe0] sm:$0xff]
  %v62 = vld [vmem:[%s1 + $0xe8] sm:$0xff]
  %v63 = vld [vmem:[%s1 + $0xf0] sm:$0xff]
  %v64 = vld [vmem:[%s1 + $0xf8] sm:$0xff]
  %v65 = vld [vmem:[%s1 + $0x100] sm:$0xf]
  %v66 = vld [vmem:[%s1 + $0x104] sm:$0xff]
  %v67 = vld [vmem:[%s1 + $0x10c] sm:$0xff]
  %v68 = vld [vmem:[%s1 + $0x114] sm:$0xff]
  %v69 = vld [vmem:[%s1 + $0x11c] sm:$0xff]
  %v70 = vld [vmem:[%s1 + $0x124] sm:$0xff]
  %v71 = vld [vmem:[%s1 + $0x12c] sm:$0xff]
  %v72 = vld [vmem:[%s1 + $0x134] sm:$0xf]
  %v73 = vld [vmem:[%s1 + $0x138] sm:$0xff]
  %v74 = vld [vmem:[%s1 + $0x140] sm:$0xff]
  %v75 = vld [vmem:[%s1 + $0x148] sm:$0xff]
  %v76 = vld [vmem:[%s1 + $0x150] sm:$0xff]
  %v77 = vld [vmem:[%s1 + $0x158] sm:$0xff]
  %v78 = vld [vmem:[%s1 + $0x160] sm:$0xff]
  %v79 = vld [vmem:[%s1 + $0x168] sm:$0xf]
  %v80 = vld [vmem:[%s1 + $0x16c] sm:$0xff]
  %v81 = vld [vmem:[%s1 + $0x174] sm:$0xff]
  %v82 = vld [vmem:[%s1 + $0x17c] sm:$0xff]
  %v83 = vld [vmem:[%s1 + $0x184] sm:$0xff]
  %v84 = vld [vmem:[%s1 + $0x18c] sm:$0xff]
  %v85 = vld [vmem:[%s1 + $0x194] sm:$0xff]
  %v86 = vld [vmem:[%s1 + $0x19c] sm:$0xf]
  %v87 = vld [vmem:[%s1 + $0x1a0] sm:$0xff]
  %v88 = vld [vmem:[%s1 + $0x1a8] sm:$0xff]
  %v89 = vld [vmem:[%s1 + $0x1b0] sm:$0xff]
  %v90 = vld [vmem:[%s1 + $0x1b8] sm:$0xff]
  %v91 = vld [vmem:[%s1 + $0x1c0] sm:$0xff]
  %v92 = vld [vmem:[%s1 + $0x1c8] sm:$0xff]
  %v93 = vld [vmem:[%s1 + $0x1d0] sm:$0xf]
  %v94 = vld [vmem:[%s1 + $0x1d4] sm:$0xff]
  %v95 = vld [vmem:[%s1 + $0x1dc] sm:$0xff]
  %v96 = vld [vmem:[%s1 + $0x1e4] sm:$0xff]
  %v97 = vld [vmem:[%s1 + $0x1ec] sm:$0xff]
  %v98 = vld [vmem:[%s1 + $0x1f4] sm:$0xff]
  %v99 = vld [vmem:[%s1 + $0x1fc] sm:$0xff]
  %v100 = vld [vmem:[%s1 + $0x204] sm:$0xf]
  %v101 = vld [vmem:[%s1 + $0x208] sm:$0xff]
  %v102 = vld [vmem:[%s1 + $0x210] sm:$0xff]
  %v103 = vld [vmem:[%s1 + $0x218] sm:$0xff]
  %v104 = vld [vmem:[%s1 + $0x220] sm:$0xff]
  %v105 = vld [vmem:[%s1 + $0x228] sm:$0xff]
  %v106 = vld [vmem:[%s1 + $0x230] sm:$0xff]
  %v107 = vld [vmem:[%s1 + $0x238] sm:$0xf]
  %v108 = vld [vmem:[%s1 + $0x23c] sm:$0xff]
  %v109 = vld [vmem:[%s1 + $0x244] sm:$0xff]
  %v110 = vld [vmem:[%s1 + $0x24c] sm:$0xff]
  %v111 = vld [vmem:[%s1 + $0x254] sm:$0xff]
  %v112 = vld [vmem:[%s1 + $0x25c] sm:$0xff]
  %v113 = vld [vmem:[%s1 + $0x264] sm:$0xff]
  %v114 = vld [vmem:[%s1 + $0x26c] sm:$0xf]
  %v115 = vld [vmem:[%s1 + $0x270] sm:$0xff]
  %v116 = vld [vmem:[%s1 + $0x278] sm:$0xff]
  %v117 = vld [vmem:[%s1 + $0x280] sm:$0xff]
  %v118 = vld [vmem:[%s1 + $0x288] sm:$0xff]
  %v119 = vld [vmem:[%s1 + $0x290] sm:$0xff]
  %v120 = vld [vmem:[%s1 + $0x298] sm:$0xff]
  %v121 = vld [vmem:[%s1 + $0x2a0] sm:$0xf]
  %v122 = vld [vmem:[%s1 + $0x2a4] sm:$0xff]
  %v123 = vld [vmem:[%s1 + $0x2ac] sm:$0xff]
  %v124 = vld [vmem:[%s1 + $0x2b4] sm:$0xff]
  %v125 = vld [vmem:[%s1 + $0x2bc] sm:$0xff]
  %v126 = vld [vmem:[%s1 + $0x2c4] sm:$0xff]
  %v127 = vld [vmem:[%s1 + $0x2cc] sm:$0xff]
  %v128 = vld [vmem:[%s1 + $0x2d4] sm:$0xf]
  %v129 = vld [vmem:[%s1 + $0x2d8] sm:$0xff]
  %v130 = vld [vmem:[%s1 + $0x2e0] sm:$0xff]
  %v131 = vld [vmem:[%s1 + $0x2e8] sm:$0xff]
  %v132 = vld [vmem:[%s1 + $0x2f0] sm:$0xff]
  %v133 = vld [vmem:[%s1 + $0x2f8] sm:$0xff]
  %v134 = vld [vmem:[%s1 + $0x300] sm:$0xff]
  %v135 = vld [vmem:[%s1 + $0x308] sm:$0xf]
  %v136 = vld [vmem:[%s1 + $0x30c] sm:$0xff]
  %v137 = vld [vmem:[%s1 + $0x314] sm:$0xff]
  %v138 = vld [vmem:[%s1 + $0x31c] sm:$0xff]
  %v139 = vld [vmem:[%s1 + $0x324] sm:$0xff]
  %v140 = vld [vmem:[%s1 + $0x32c] sm:$0xff]
  %v141 = vld [vmem:[%s1 + $0x334] sm:$0xff]
  %v142 = vld [vmem:[%s1 + $0x33c] sm:$0xf]
  %v143 = vld [vmem:[%s1 + $0x340] sm:$0xff]
  %v144 = vld [vmem:[%s1 + $0x348] sm:$0xff]
  %v145 = vld [vmem:[%s1 + $0x350] sm:$0xff]
  %v146 = vld [vmem:[%s1 + $0x358] sm:$0xff]
  %v147 = vld [vmem:[%s1 + $0x360] sm:$0xff]
  %v148 = vld [vmem:[%s1 + $0x368] sm:$0xff]
  %v149 = vld [vmem:[%s1 + $0x370] sm:$0xf]
  %v150 = vld [vmem:[%s1 + $0x374] sm:$0xff]
  %v151 = vld [vmem:[%s1 + $0x37c] sm:$0xff]
  %v152 = vld [vmem:[%s1 + $0x384] sm:$0xff]
  %v153 = vld [vmem:[%s1 + $0x38c] sm:$0xff]
  %v154 = vld [vmem:[%s1 + $0x394] sm:$0xff]
  %v155 = vld [vmem:[%s1 + $0x39c] sm:$0xff]
  %v156 = vld [vmem:[%s1 + $0x3a4] sm:$0xf]
  %v157 = vld [vmem:[%s1 + $0x3a8] sm:$0xff]
  %v158 = vld [vmem:[%s1 + $0x3b0] sm:$0xff]
  %v159 = vld [vmem:[%s1 + $0x3b8] sm:$0xff]
  %v160 = vld [vmem:[%s1 + $0x3c0] sm:$0xff]
  %v161 = vld [vmem:[%s1 + $0x3c8] sm:$0xff]
  %v162 = vld [vmem:[%s1 + $0x3d0] sm:$0xff]
  %v163 = vld [vmem:[%s1 + $0x3d8] sm:$0xf]
  %v164 = vld [vmem:[%s1 + $0x3dc] sm:$0xff]
  %v165 = vld [vmem:[%s1 + $0x3e4] sm:$0xff]
  %v166 = vld [vmem:[%s1 + $0x3ec] sm:$0xff]
  %v167 = vld [vmem:[%s1 + $0x3f4] sm:$0xff]
  %v168 = vld [vmem:[%s1 + $0x3fc] sm:$0xff]
  %v169 = vld [vmem:[%s1 + $0x404] sm:$0xff]
  %v170 = vld [vmem:[%s1 + $0x40c] sm:$0xf]
  %v171 = vld [vmem:[%s1 + $0x410] sm:$0xff]
  %v172 = vld [vmem:[%s1 + $0x418] sm:$0xff]
  %v173 = vld [vmem:[%s1 + $0x420] sm:$0xff]
  %v174 = vld [vmem:[%s1 + $0x428] sm:$0xff]
  %v175 = vld [vmem:[%s1 + $0x430] sm:$0xff]
  %v176 = vld [vmem:[%s1 + $0x438] sm:$0xff]
  %v177 = vld [vmem:[%s1 + $0x440] sm:$0xf]
  %v178 = vld [vmem:[%s1 + $0x444] sm:$0xff]
  %v179 = vld [vmem:[%s1 + $0x44c] sm:$0xff]
  %v180 = vld [vmem:[%s1 + $0x454] sm:$0xff]
  %v181 = vld [vmem:[%s1 + $0x45c] sm:$0xff]
  %v182 = vld [vmem:[%s1 + $0x464] sm:$0xff]
  %v183 = vld [vmem:[%s1 + $0x46c] sm:$0xff]
  %v184 = vld [vmem:[%s1 + $0x474] sm:$0xf]
  %v185 = vld [vmem:[%s1 + $0x478] sm:$0xff]
  %v186 = vld [vmem:[%s1 + $0x480] sm:$0xff]
  %v187 = vld [vmem:[%s1 + $0x488] sm:$0xff]
  %v188 = vld [vmem:[%s1 + $0x490] sm:$0xff]
  %v189 = vld [vmem:[%s1 + $0x498] sm:$0xff]
  %v190 = vld [vmem:[%s1 + $0x4a0] sm:$0xff]
  %v191 = vld [vmem:[%s1 + $0x4a8] sm:$0xf]
  %v192 = vld [vmem:[%s1 + $0x4ac] sm:$0xff]
  %v193 = vld [vmem:[%s1 + $0x4b4] sm:$0xff]
  %v194 = vld [vmem:[%s1 + $0x4bc] sm:$0xff]
  %v195 = vld [vmem:[%s1 + $0x4c4] sm:$0xff]
  %v196 = vld [vmem:[%s1 + $0x4cc] sm:$0xff]
  %v197 = vld [vmem:[%s1 + $0x4d4] sm:$0xff]
  %v198 = vld [vmem:[%s1 + $0x4dc] sm:$0xf]
  %v199 = vld [vmem:[%s1 + $0x4e0] sm:$0xff]
  %v200 = vld [vmem:[%s1 + $0x4e8] sm:$0xff]
  %v201 = vld [vmem:[%s1 + $0x4f0] sm:$0xff]
  %v202 = vld [vmem:[%s1 + $0x4f8] sm:$0xff]
  %v203 = vld [vmem:[%s1 + $0x500] sm:$0xff]
  %v204 = vld [vmem:[%s1 + $0x508] sm:$0xff]
  %v205 = vld [vmem:[%s1 + $0x510] sm:$0xf]
  %v206 = vld [vmem:[%s1 + $0x514] sm:$0xff]
  %v207 = vld [vmem:[%s1 + $0x51c] sm:$0xff]
  %v208 = vld [vmem:[%s1 + $0x524] sm:$0xff]
  %v209 = vld [vmem:[%s1 + $0x52c] sm:$0xff]
  %v210 = vld [vmem:[%s1 + $0x534] sm:$0xff]
  %v211 = vld [vmem:[%s1 + $0x53c] sm:$0xff]
  %v212 = vld [vmem:[%s1 + $0x544] sm:$0xf]
  %v213 = vld [vmem:[%s1 + $0x548] sm:$0xff]
  %v214 = vld [vmem:[%s1 + $0x550] sm:$0xff]
  %v215 = vld [vmem:[%s1 + $0x558] sm:$0xff]
  %v216 = vld [vmem:[%s1 + $0x560] sm:$0xff]
  %v217 = vld [vmem:[%s1 + $0x568] sm:$0xff]
  %v218 = vld [vmem:[%s1 + $0x570] sm:$0xff]
  %v219 = vld [vmem:[%s1 + $0x578] sm:$0xf]
  %v220 = vld [vmem:[%s1 + $0x57c] sm:$0xff]
  %v221 = vld [vmem:[%s1 + $0x584] sm:$0xff]
  %v222 = vld [vmem:[%s1 + $0x58c] sm:$0xff]
  %v223 = vld [vmem:[%s1 + $0x594] sm:$0xff]
  %v224 = vld [vmem:[%s1 + $0x59c] sm:$0xff]
  %v225 = vld [vmem:[%s1 + $0x5a4] sm:$0xff]
  %v226 = vld [vmem:[%s1 + $0x5ac] sm:$0xf]
  %v227 = vld [vmem:[%s1 + $0x5b0] sm:$0xff]
  %v228 = vld [vmem:[%s1 + $0x5b8] sm:$0xff]
  %v229 = vld [vmem:[%s1 + $0x5c0] sm:$0xff]
  %v230 = vld [vmem:[%s1 + $0x5c8] sm:$0xff]
  %v231 = vld [vmem:[%s1 + $0x5d0] sm:$0xff]
  %v232 = vld [vmem:[%s1 + $0x5d8] sm:$0xff]
  %v233 = vld [vmem:[%s1 + $0x5e0] sm:$0xf]
  %v234 = vld [vmem:[%s1 + $0x5e4] sm:$0xff]
  %v235 = vld [vmem:[%s1 + $0x5ec] sm:$0xff]
  %v236 = vld [vmem:[%s1 + $0x5f4] sm:$0xff]
  %v237 = vld [vmem:[%s1 + $0x5fc] sm:$0xff]
  %v238 = vld [vmem:[%s1 + $0x604] sm:$0xff]
  %v239 = vld [vmem:[%s1 + $0x60c] sm:$0xff]
  %v240 = vld [vmem:[%s1 + $0x614] sm:$0xf]
  %v241 = vld [vmem:[%s1 + $0x618] sm:$0xff]
  %v242 = vld [vmem:[%s1 + $0x620] sm:$0xff]
  %v243 = vld [vmem:[%s1 + $0x628] sm:$0xff]
  %v244 = vld [vmem:[%s1 + $0x630] sm:$0xff]
  %v245 = vld [vmem:[%s1 + $0x638] sm:$0xff]
  %v246 = vld [vmem:[%s1 + $0x640] sm:$0xff]
  %v247 = vld [vmem:[%s1 + $0x648] sm:$0xf]
  %v248 = vld [vmem:[%s1 + $0x64c] sm:$0xff]
  %v249 = vld [vmem:[%s1 + $0x654] sm:$0xff]
  %v250 = vld [vmem:[%s1 + $0x65c] sm:$0xff]
  %v251 = vld [vmem:[%s1 + $0x664] sm:$0xff]
  %v252 = vld [vmem:[%s1 + $0x66c] sm:$0xff]
  %v253 = vld [vmem:[%s1 + $0x674] sm:$0xff]
  %v254 = vld [vmem:[%s1 + $0x67c] sm:$0xf]
  %v255 = vld [vmem:[%s2] sm:$0xff]
  %v256 = vld [vmem:[%s2 + $0x8] sm:$0x1f]
  %v259 = vlaneseq
  %v260 = vshrl.u32 %v259, 7
  %v261 = vsub.s32 0, %v260
  %v262 = vrot.slane %v255, %v261
  %v263 = vlaneseq
  %v264 = vshrl.u32 %v263, 7
  %v265 = vsub.s32 1, %v264
  %v266 = vrot.slane %v255, %v265
  %v267 = vlaneseq
  %v268 = vshrl.u32 %v267, 7
  %v269 = vsub.s32 2, %v268
  %v270 = vrot.slane %v255, %v269
  %v271 = vlaneseq
  %v272 = vshrl.u32 %v271, 7
  %v273 = vsub.s32 3, %v272
  %v274 = vrot.slane %v255, %v273
  %v275 = vlaneseq
  %v276 = vshrl.u32 %v275, 7
  %v277 = vsub.s32 4, %v276
  %v278 = vrot.slane %v255, %v277
  %v279 = vlaneseq
  %v280 = vshrl.u32 %v279, 7
  %v281 = vsub.s32 5, %v280
  %v282 = vrot.slane %v255, %v281
  %v283 = vlaneseq
  %v284 = vshrl.u32 %v283, 7
  %v285 = vsub.s32 6, %v284
  %v286 = vrot.slane %v255, %v285
  %v287 = vlaneseq
  %v288 = vshrl.u32 %v287, 7
  %v289 = vsub.s32 7, %v288
  %v290 = vrot.slane %v255, %v289
  %v291 = vlaneseq
  %v292 = vshrl.u32 %v291, 7
  %v293 = vsub.s32 0, %v292
  %v294 = vrot.slane %v256, %v293
  %v295 = vlaneseq
  %v296 = vshrl.u32 %v295, 7
  %v297 = vsub.s32 1, %v296
  %v298 = vrot.slane %v256, %v297
  %v299 = vlaneseq
  %v300 = vshrl.u32 %v299, 7
  %v301 = vsub.s32 2, %v300
  %v302 = vrot.slane %v256, %v301
  %v303 = vlaneseq
  %v304 = vshrl.u32 %v303, 7
  %v305 = vsub.s32 3, %v304
  %v306 = vrot.slane %v256, %v305
  %v307 = vlaneseq
  %v308 = vshrl.u32 %v307, 7
  %v309 = vsub.s32 4, %v308
  %v310 = vrot.slane %v256, %v309
  %v340 = vunpack.c.l.b16 %v15
  %v341 = vunpack.c.h.b16 %v15
  %v342 = vunpack.c.l.b16 %v16
  %v343 = vunpack.c.h.b16 %v16
  %v344 = vunpack.c.l.b16 %v17
  %v345 = vunpack.c.h.b16 %v17
  %v346 = vunpack.c.l.b16 %v18
  %v347 = vunpack.c.h.b16 %v18
  %v348 = vunpack.c.l.b16 %v19
  %v349 = vunpack.c.h.b16 %v19
  %v350 = vunpack.c.l.b16 %v20
  %v351 = vunpack.c.h.b16 %v20
  %v352 = vunpack.c.l.b16 %v21
  %v353 = vunpack.c.h.b16 %v21
  %v354 = vunpack.c.l.b16 %v22
  %v355 = vunpack.c.h.b16 %v22
  %v356 = vunpack.c.l.b16 %v23
  %v357 = vunpack.c.h.b16 %v23
  %v358 = vunpack.c.l.b16 %v24
  %v359 = vunpack.c.h.b16 %v24
  %v360 = vunpack.c.l.b16 %v25
  %v361 = vunpack.c.h.b16 %v25
  %v362 = vunpack.c.l.b16 %v26
  %v363 = vunpack.c.h.b16 %v26
  %v364 = vunpack.c.l.b16 %v27
  %v365 = vunpack.c.h.b16 %v27
  %v366 = vunpack.c.l.b16 %v28
  %v367 = vunpack.c.h.b16 %v28
  %v368 = vunpack.c.l.b16 %v29
  %v369 = vunpack.c.h.b16 %v29
  %v370 = vunpack.c.l.b16 %v30
  %v371 = vunpack.c.h.b16 %v30
  %v372 = vpack.c.b16 %v342, %v340
  %v373 = vpack.c.b16 %v343, %v341
  %v374 = vpack.c.b16 %v346, %v344
  %v375 = vpack.c.b16 %v347, %v345
  %v376 = vpack.c.b16 %v350, %v348
  %v377 = vpack.c.b16 %v351, %v349
  %v378 = vpack.c.b16 %v354, %v352
  %v379 = vpack.c.b16 %v355, %v353
  %v380 = vpack.c.b16 %v358, %v356
  %v381 = vpack.c.b16 %v359, %v357
  %v382 = vpack.c.b16 %v362, %v360
  %v383 = vpack.c.b16 %v363, %v361
  %v384 = vpack.c.b16 %v366, %v364
  %v385 = vpack.c.b16 %v367, %v365
  %v386 = vpack.c.b16 %v370, %v368
  %v387 = vpack.c.b16 %v371, %v369
  %v628 = vunpack.c.l.b16 %v31
  %v629 = vunpack.c.h.b16 %v31
  %v630 = vunpack.c.l.b16 %v32
  %v631 = vunpack.c.h.b16 %v32
  %v632 = vunpack.c.l.b16 %v33
  %v633 = vunpack.c.h.b16 %v33
  %v634 = vunpack.c.l.b16 %v34
  %v635 = vunpack.c.h.b16 %v34
  %v636 = vunpack.c.l.b16 %v35
  %v637 = vunpack.c.h.b16 %v35
  %v638 = vunpack.c.l.b16 %v36
  %v639 = vunpack.c.h.b16 %v36
  %v640 = vunpack.c.l.b16 %v37
  %v641 = vunpack.c.l.b16 %v38
  %v642 = vunpack.c.h.b16 %v38
  %v643 = vunpack.c.l.b16 %v39
  %v644 = vunpack.c.h.b16 %v39
  %v645 = vunpack.c.l.b16 %v40
  %v646 = vunpack.c.h.b16 %v40
  %v647 = vunpack.c.l.b16 %v41
  %v648 = vunpack.c.h.b16 %v41
  %v649 = vunpack.c.l.b16 %v42
  %v650 = vunpack.c.h.b16 %v42
  %v651 = vunpack.c.l.b16 %v43
  %v652 = vunpack.c.h.b16 %v43
  %v653 = vunpack.c.l.b16 %v44
  %v654 = vunpack.c.l.b16 %v45
  %v655 = vunpack.c.h.b16 %v45
  %v656 = vunpack.c.l.b16 %v46
  %v657 = vunpack.c.h.b16 %v46
  %v658 = vunpack.c.l.b16 %v47
  %v659 = vunpack.c.h.b16 %v47
  %v660 = vunpack.c.l.b16 %v48
  %v661 = vunpack.c.h.b16 %v48
  %v662 = vunpack.c.l.b16 %v49
  %v663 = vunpack.c.h.b16 %v49
  %v664 = vunpack.c.l.b16 %v50
  %v665 = vunpack.c.h.b16 %v50
  %v666 = vunpack.c.l.b16 %v51
  %v667 = vunpack.c.l.b16 %v52
  %v668 = vunpack.c.h.b16 %v52
  %v669 = vunpack.c.l.b16 %v53
  %v670 = vunpack.c.h.b16 %v53
  %v671 = vunpack.c.l.b16 %v54
  %v672 = vunpack.c.h.b16 %v54
  %v673 = vunpack.c.l.b16 %v55
  %v674 = vunpack.c.h.b16 %v55
  %v675 = vunpack.c.l.b16 %v56
  %v676 = vunpack.c.h.b16 %v56
  %v677 = vunpack.c.l.b16 %v57
  %v678 = vunpack.c.h.b16 %v57
  %v679 = vunpack.c.l.b16 %v58
  %v680 = vunpack.c.l.b16 %v59
  %v681 = vunpack.c.h.b16 %v59
  %v682 = vunpack.c.l.b16 %v60
  %v683 = vunpack.c.h.b16 %v60
  %v684 = vunpack.c.l.b16 %v61
  %v685 = vunpack.c.h.b16 %v61
  %v686 = vunpack.c.l.b16 %v62
  %v687 = vunpack.c.h.b16 %v62
  %v688 = vunpack.c.l.b16 %v63
  %v689 = vunpack.c.h.b16 %v63
  %v690 = vunpack.c.l.b16 %v64
  %v691 = vunpack.c.h.b16 %v64
  %v692 = vunpack.c.l.b16 %v65
  %v693 = vunpack.c.l.b16 %v66
  %v694 = vunpack.c.h.b16 %v66
  %v695 = vunpack.c.l.b16 %v67
  %v696 = vunpack.c.h.b16 %v67
  %v697 = vunpack.c.l.b16 %v68
  %v698 = vunpack.c.h.b16 %v68
  %v699 = vunpack.c.l.b16 %v69
  %v700 = vunpack.c.h.b16 %v69
  %v701 = vunpack.c.l.b16 %v70
  %v702 = vunpack.c.h.b16 %v70
  %v703 = vunpack.c.l.b16 %v71
  %v704 = vunpack.c.h.b16 %v71
  %v705 = vunpack.c.l.b16 %v72
  %v706 = vunpack.c.l.b16 %v73
  %v707 = vunpack.c.h.b16 %v73
  %v708 = vunpack.c.l.b16 %v74
  %v709 = vunpack.c.h.b16 %v74
  %v710 = vunpack.c.l.b16 %v75
  %v711 = vunpack.c.h.b16 %v75
  %v712 = vunpack.c.l.b16 %v76
  %v713 = vunpack.c.h.b16 %v76
  %v714 = vunpack.c.l.b16 %v77
  %v715 = vunpack.c.h.b16 %v77
  %v716 = vunpack.c.l.b16 %v78
  %v717 = vunpack.c.h.b16 %v78
  %v718 = vunpack.c.l.b16 %v79
  %v719 = vunpack.c.l.b16 %v80
  %v720 = vunpack.c.h.b16 %v80
  %v721 = vunpack.c.l.b16 %v81
  %v722 = vunpack.c.h.b16 %v81
  %v723 = vunpack.c.l.b16 %v82
  %v724 = vunpack.c.h.b16 %v82
  %v725 = vunpack.c.l.b16 %v83
  %v726 = vunpack.c.h.b16 %v83
  %v727 = vunpack.c.l.b16 %v84
  %v728 = vunpack.c.h.b16 %v84
  %v729 = vunpack.c.l.b16 %v85
  %v730 = vunpack.c.h.b16 %v85
  %v731 = vunpack.c.l.b16 %v86
  %v732 = vunpack.c.l.b16 %v87
  %v733 = vunpack.c.h.b16 %v87
  %v734 = vunpack.c.l.b16 %v88
  %v735 = vunpack.c.h.b16 %v88
  %v736 = vunpack.c.l.b16 %v89
  %v737 = vunpack.c.h.b16 %v89
  %v738 = vunpack.c.l.b16 %v90
  %v739 = vunpack.c.h.b16 %v90
  %v740 = vunpack.c.l.b16 %v91
  %v741 = vunpack.c.h.b16 %v91
  %v742 = vunpack.c.l.b16 %v92
  %v743 = vunpack.c.h.b16 %v92
  %v744 = vunpack.c.l.b16 %v93
  %v745 = vunpack.c.l.b16 %v94
  %v746 = vunpack.c.h.b16 %v94
  %v747 = vunpack.c.l.b16 %v95
  %v748 = vunpack.c.h.b16 %v95
  %v749 = vunpack.c.l.b16 %v96
  %v750 = vunpack.c.h.b16 %v96
  %v751 = vunpack.c.l.b16 %v97
  %v752 = vunpack.c.h.b16 %v97
  %v753 = vunpack.c.l.b16 %v98
  %v754 = vunpack.c.h.b16 %v98
  %v755 = vunpack.c.l.b16 %v99
  %v756 = vunpack.c.h.b16 %v99
  %v757 = vunpack.c.l.b16 %v100
  %v758 = vunpack.c.l.b16 %v101
  %v759 = vunpack.c.h.b16 %v101
  %v760 = vunpack.c.l.b16 %v102
  %v761 = vunpack.c.h.b16 %v102
  %v762 = vunpack.c.l.b16 %v103
  %v763 = vunpack.c.h.b16 %v103
  %v764 = vunpack.c.l.b16 %v104
  %v765 = vunpack.c.h.b16 %v104
  %v766 = vunpack.c.l.b16 %v105
  %v767 = vunpack.c.h.b16 %v105
  %v768 = vunpack.c.l.b16 %v106
  %v769 = vunpack.c.h.b16 %v106
  %v770 = vunpack.c.l.b16 %v107
  %v771 = vunpack.c.l.b16 %v108
  %v772 = vunpack.c.h.b16 %v108
  %v773 = vunpack.c.l.b16 %v109
  %v774 = vunpack.c.h.b16 %v109
  %v775 = vunpack.c.l.b16 %v110
  %v776 = vunpack.c.h.b16 %v110
  %v777 = vunpack.c.l.b16 %v111
  %v778 = vunpack.c.h.b16 %v111
  %v779 = vunpack.c.l.b16 %v112
  %v780 = vunpack.c.h.b16 %v112
  %v781 = vunpack.c.l.b16 %v113
  %v782 = vunpack.c.h.b16 %v113
  %v783 = vunpack.c.l.b16 %v114
  %v784 = vunpack.c.l.b16 %v115
  %v785 = vunpack.c.h.b16 %v115
  %v786 = vunpack.c.l.b16 %v116
  %v787 = vunpack.c.h.b16 %v116
  %v788 = vunpack.c.l.b16 %v117
  %v789 = vunpack.c.h.b16 %v117
  %v790 = vunpack.c.l.b16 %v118
  %v791 = vunpack.c.h.b16 %v118
  %v792 = vunpack.c.l.b16 %v119
  %v793 = vunpack.c.h.b16 %v119
  %v794 = vunpack.c.l.b16 %v120
  %v795 = vunpack.c.h.b16 %v120
  %v796 = vunpack.c.l.b16 %v121
  %v797 = vunpack.c.l.b16 %v122
  %v798 = vunpack.c.h.b16 %v122
  %v799 = vunpack.c.l.b16 %v123
  %v800 = vunpack.c.h.b16 %v123
  %v801 = vunpack.c.l.b16 %v124
  %v802 = vunpack.c.h.b16 %v124
  %v803 = vunpack.c.l.b16 %v125
  %v804 = vunpack.c.h.b16 %v125
  %v805 = vunpack.c.l.b16 %v126
  %v806 = vunpack.c.h.b16 %v126
  %v807 = vunpack.c.l.b16 %v127
  %v808 = vunpack.c.h.b16 %v127
  %v809 = vunpack.c.l.b16 %v128
  %v810 = vunpack.c.l.b16 %v129
  %v811 = vunpack.c.h.b16 %v129
  %v812 = vunpack.c.l.b16 %v130
  %v813 = vunpack.c.h.b16 %v130
  %v814 = vunpack.c.l.b16 %v131
  %v815 = vunpack.c.h.b16 %v131
  %v816 = vunpack.c.l.b16 %v132
  %v817 = vunpack.c.h.b16 %v132
  %v818 = vunpack.c.l.b16 %v133
  %v819 = vunpack.c.h.b16 %v133
  %v820 = vunpack.c.l.b16 %v134
  %v821 = vunpack.c.h.b16 %v134
  %v822 = vunpack.c.l.b16 %v135
  %v823 = vunpack.c.l.b16 %v136
  %v824 = vunpack.c.h.b16 %v136
  %v825 = vunpack.c.l.b16 %v137
  %v826 = vunpack.c.h.b16 %v137
  %v827 = vunpack.c.l.b16 %v138
  %v828 = vunpack.c.h.b16 %v138
  %v829 = vunpack.c.l.b16 %v139
  %v830 = vunpack.c.h.b16 %v139
  %v831 = vunpack.c.l.b16 %v140
  %v832 = vunpack.c.h.b16 %v140
  %v833 = vunpack.c.l.b16 %v141
  %v834 = vunpack.c.h.b16 %v141
  %v835 = vunpack.c.l.b16 %v142
  %v836 = vunpack.c.l.b16 %v143
  %v837 = vunpack.c.h.b16 %v143
  %v838 = vunpack.c.l.b16 %v144
  %v839 = vunpack.c.h.b16 %v144
  %v840 = vunpack.c.l.b16 %v145
  %v841 = vunpack.c.h.b16 %v145
  %v842 = vunpack.c.l.b16 %v146
  %v843 = vunpack.c.h.b16 %v146
  %v844 = vunpack.c.l.b16 %v147
  %v845 = vunpack.c.h.b16 %v147
  %v846 = vunpack.c.l.b16 %v148
  %v847 = vunpack.c.h.b16 %v148
  %v848 = vunpack.c.l.b16 %v149
  %v849 = vunpack.c.l.b16 %v150
  %v850 = vunpack.c.h.b16 %v150
  %v851 = vunpack.c.l.b16 %v151
  %v852 = vunpack.c.h.b16 %v151
  %v853 = vunpack.c.l.b16 %v152
  %v854 = vunpack.c.h.b16 %v152
  %v855 = vunpack.c.l.b16 %v153
  %v856 = vunpack.c.h.b16 %v153
  %v857 = vunpack.c.l.b16 %v154
  %v858 = vunpack.c.h.b16 %v154
  %v859 = vunpack.c.l.b16 %v155
  %v860 = vunpack.c.h.b16 %v155
  %v861 = vunpack.c.l.b16 %v156
  %v862 = vunpack.c.l.b16 %v157
  %v863 = vunpack.c.h.b16 %v157
  %v864 = vunpack.c.l.b16 %v158
  %v865 = vunpack.c.h.b16 %v158
  %v866 = vunpack.c.l.b16 %v159
  %v867 = vunpack.c.h.b16 %v159
  %v868 = vunpack.c.l.b16 %v160
  %v869 = vunpack.c.h.b16 %v160
  %v870 = vunpack.c.l.b16 %v161
  %v871 = vunpack.c.h.b16 %v161
  %v872 = vunpack.c.l.b16 %v162
  %v873 = vunpack.c.h.b16 %v162
  %v874 = vunpack.c.l.b16 %v163
  %v875 = vunpack.c.l.b16 %v164
  %v876 = vunpack.c.h.b16 %v164
  %v877 = vunpack.c.l.b16 %v165
  %v878 = vunpack.c.h.b16 %v165
  %v879 = vunpack.c.l.b16 %v166
  %v880 = vunpack.c.h.b16 %v166
  %v881 = vunpack.c.l.b16 %v167
  %v882 = vunpack.c.h.b16 %v167
  %v883 = vunpack.c.l.b16 %v168
  %v884 = vunpack.c.h.b16 %v168
  %v885 = vunpack.c.l.b16 %v169
  %v886 = vunpack.c.h.b16 %v169
  %v887 = vunpack.c.l.b16 %v170
  %v888 = vunpack.c.l.b16 %v171
  %v889 = vunpack.c.h.b16 %v171
  %v890 = vunpack.c.l.b16 %v172
  %v891 = vunpack.c.h.b16 %v172
  %v892 = vunpack.c.l.b16 %v173
  %v893 = vunpack.c.h.b16 %v173
  %v894 = vunpack.c.l.b16 %v174
  %v895 = vunpack.c.h.b16 %v174
  %v896 = vunpack.c.l.b16 %v175
  %v897 = vunpack.c.h.b16 %v175
  %v898 = vunpack.c.l.b16 %v176
  %v899 = vunpack.c.h.b16 %v176
  %v900 = vunpack.c.l.b16 %v177
  %v901 = vunpack.c.l.b16 %v178
  %v902 = vunpack.c.h.b16 %v178
  %v903 = vunpack.c.l.b16 %v179
  %v904 = vunpack.c.h.b16 %v179
  %v905 = vunpack.c.l.b16 %v180
  %v906 = vunpack.c.h.b16 %v180
  %v907 = vunpack.c.l.b16 %v181
  %v908 = vunpack.c.h.b16 %v181
  %v909 = vunpack.c.l.b16 %v182
  %v910 = vunpack.c.h.b16 %v182
  %v911 = vunpack.c.l.b16 %v183
  %v912 = vunpack.c.h.b16 %v183
  %v913 = vunpack.c.l.b16 %v184
  %v914 = vunpack.c.l.b16 %v185
  %v915 = vunpack.c.h.b16 %v185
  %v916 = vunpack.c.l.b16 %v186
  %v917 = vunpack.c.h.b16 %v186
  %v918 = vunpack.c.l.b16 %v187
  %v919 = vunpack.c.h.b16 %v187
  %v920 = vunpack.c.l.b16 %v188
  %v921 = vunpack.c.h.b16 %v188
  %v922 = vunpack.c.l.b16 %v189
  %v923 = vunpack.c.h.b16 %v189
  %v924 = vunpack.c.l.b16 %v190
  %v925 = vunpack.c.h.b16 %v190
  %v926 = vunpack.c.l.b16 %v191
  %v927 = vunpack.c.l.b16 %v192
  %v928 = vunpack.c.h.b16 %v192
  %v929 = vunpack.c.l.b16 %v193
  %v930 = vunpack.c.h.b16 %v193
  %v931 = vunpack.c.l.b16 %v194
  %v932 = vunpack.c.h.b16 %v194
  %v933 = vunpack.c.l.b16 %v195
  %v934 = vunpack.c.h.b16 %v195
  %v935 = vunpack.c.l.b16 %v196
  %v936 = vunpack.c.h.b16 %v196
  %v937 = vunpack.c.l.b16 %v197
  %v938 = vunpack.c.h.b16 %v197
  %v939 = vunpack.c.l.b16 %v198
  %v940 = vunpack.c.l.b16 %v199
  %v941 = vunpack.c.h.b16 %v199
  %v942 = vunpack.c.l.b16 %v200
  %v943 = vunpack.c.h.b16 %v200
  %v944 = vunpack.c.l.b16 %v201
  %v945 = vunpack.c.h.b16 %v201
  %v946 = vunpack.c.l.b16 %v202
  %v947 = vunpack.c.h.b16 %v202
  %v948 = vunpack.c.l.b16 %v203
  %v949 = vunpack.c.h.b16 %v203
  %v950 = vunpack.c.l.b16 %v204
  %v951 = vunpack.c.h.b16 %v204
  %v952 = vunpack.c.l.b16 %v205
  %v953 = vunpack.c.l.b16 %v206
  %v954 = vunpack.c.h.b16 %v206
  %v955 = vunpack.c.l.b16 %v207
  %v956 = vunpack.c.h.b16 %v207
  %v957 = vunpack.c.l.b16 %v208
  %v958 = vunpack.c.h.b16 %v208
  %v959 = vunpack.c.l.b16 %v209
  %v960 = vunpack.c.h.b16 %v209
  %v961 = vunpack.c.l.b16 %v210
  %v962 = vunpack.c.h.b16 %v210
  %v963 = vunpack.c.l.b16 %v211
  %v964 = vunpack.c.h.b16 %v211
  %v965 = vunpack.c.l.b16 %v212
  %v966 = vunpack.c.l.b16 %v213
  %v967 = vunpack.c.h.b16 %v213
  %v968 = vunpack.c.l.b16 %v214
  %v969 = vunpack.c.h.b16 %v214
  %v970 = vunpack.c.l.b16 %v215
  %v971 = vunpack.c.h.b16 %v215
  %v972 = vunpack.c.l.b16 %v216
  %v973 = vunpack.c.h.b16 %v216
  %v974 = vunpack.c.l.b16 %v217
  %v975 = vunpack.c.h.b16 %v217
  %v976 = vunpack.c.l.b16 %v218
  %v977 = vunpack.c.h.b16 %v218
  %v978 = vunpack.c.l.b16 %v219
  %v979 = vunpack.c.l.b16 %v220
  %v980 = vunpack.c.h.b16 %v220
  %v981 = vunpack.c.l.b16 %v221
  %v982 = vunpack.c.h.b16 %v221
  %v983 = vunpack.c.l.b16 %v222
  %v984 = vunpack.c.h.b16 %v222
  %v985 = vunpack.c.l.b16 %v223
  %v986 = vunpack.c.h.b16 %v223
  %v987 = vunpack.c.l.b16 %v224
  %v988 = vunpack.c.h.b16 %v224
  %v989 = vunpack.c.l.b16 %v225
  %v990 = vunpack.c.h.b16 %v225
  %v991 = vunpack.c.l.b16 %v226
  %v992 = vunpack.c.l.b16 %v227
  %v993 = vunpack.c.h.b16 %v227
  %v994 = vunpack.c.l.b16 %v228
  %v995 = vunpack.c.h.b16 %v228
  %v996 = vunpack.c.l.b16 %v229
  %v997 = vunpack.c.h.b16 %v229
  %v998 = vunpack.c.l.b16 %v230
  %v999 = vunpack.c.h.b16 %v230
  %v1000 = vunpack.c.l.b16 %v231
  %v1001 = vunpack.c.h.b16 %v231
  %v1002 = vunpack.c.l.b16 %v232
  %v1003 = vunpack.c.h.b16 %v232
  %v1004 = vunpack.c.l.b16 %v233
  %v1005 = vunpack.c.l.b16 %v234
  %v1006 = vunpack.c.h.b16 %v234
  %v1007 = vunpack.c.l.b16 %v235
  %v1008 = vunpack.c.h.b16 %v235
  %v1009 = vunpack.c.l.b16 %v236
  %v1010 = vunpack.c.h.b16 %v236
  %v1011 = vunpack.c.l.b16 %v237
  %v1012 = vunpack.c.h.b16 %v237
  %v1013 = vunpack.c.l.b16 %v238
  %v1014 = vunpack.c.h.b16 %v238
  %v1015 = vunpack.c.l.b16 %v239
  %v1016 = vunpack.c.h.b16 %v239
  %v1017 = vunpack.c.l.b16 %v240
  %v1018 = vunpack.c.l.b16 %v241
  %v1019 = vunpack.c.h.b16 %v241
  %v1020 = vunpack.c.l.b16 %v242
  %v1021 = vunpack.c.h.b16 %v242
  %v1022 = vunpack.c.l.b16 %v243
  %v1023 = vunpack.c.h.b16 %v243
  %v1024 = vunpack.c.l.b16 %v244
  %v1025 = vunpack.c.h.b16 %v244
  %v1026 = vunpack.c.l.b16 %v245
  %v1027 = vunpack.c.h.b16 %v245
  %v1028 = vunpack.c.l.b16 %v246
  %v1029 = vunpack.c.h.b16 %v246
  %v1030 = vunpack.c.l.b16 %v247
  %v1031 = vunpack.c.l.b16 %v248
  %v1032 = vunpack.c.h.b16 %v248
  %v1033 = vunpack.c.l.b16 %v249
  %v1034 = vunpack.c.h.b16 %v249
  %v1035 = vunpack.c.l.b16 %v250
  %v1036 = vunpack.c.h.b16 %v250
  %v1037 = vunpack.c.l.b16 %v251
  %v1038 = vunpack.c.h.b16 %v251
  %v1039 = vunpack.c.l.b16 %v252
  %v1040 = vunpack.c.h.b16 %v252
  %v1041 = vunpack.c.l.b16 %v253
  %v1042 = vunpack.c.h.b16 %v253
  %v1043 = vunpack.c.l.b16 %v254
  %v1044 = vpack.c.b16 %v641, %v628
  %v1045 = vpack.c.b16 %v642, %v629
  %v1046 = vpack.c.b16 %v643, %v630
  %v1047 = vpack.c.b16 %v644, %v631
  %v1048 = vpack.c.b16 %v645, %v632
  %v1049 = vpack.c.b16 %v646, %v633
  %v1050 = vpack.c.b16 %v647, %v634
  %v1051 = vpack.c.b16 %v648, %v635
  %v1052 = vpack.c.b16 %v649, %v636
  %v1053 = vpack.c.b16 %v650, %v637
  %v1054 = vpack.c.b16 %v651, %v638
  %v1055 = vpack.c.b16 %v652, %v639
  %v1056 = vpack.c.b16 %v653, %v640
  %v1057 = vpack.c.b16 %v667, %v654
  %v1058 = vpack.c.b16 %v668, %v655
  %v1059 = vpack.c.b16 %v669, %v656
  %v1060 = vpack.c.b16 %v670, %v657
  %v1061 = vpack.c.b16 %v671, %v658
  %v1062 = vpack.c.b16 %v672, %v659
  %v1063 = vpack.c.b16 %v673, %v660
  %v1064 = vpack.c.b16 %v674, %v661
  %v1065 = vpack.c.b16 %v675, %v662
  %v1066 = vpack.c.b16 %v676, %v663
  %v1067 = vpack.c.b16 %v677, %v664
  %v1068 = vpack.c.b16 %v678, %v665
  %v1069 = vpack.c.b16 %v679, %v666
  %v1070 = vpack.c.b16 %v693, %v680
  %v1071 = vpack.c.b16 %v694, %v681
  %v1072 = vpack.c.b16 %v695, %v682
  %v1073 = vpack.c.b16 %v696, %v683
  %v1074 = vpack.c.b16 %v697, %v684
  %v1075 = vpack.c.b16 %v698, %v685
  %v1076 = vpack.c.b16 %v699, %v686
  %v1077 = vpack.c.b16 %v700, %v687
  %v1078 = vpack.c.b16 %v701, %v688
  %v1079 = vpack.c.b16 %v702, %v689
  %v1080 = vpack.c.b16 %v703, %v690
  %v1081 = vpack.c.b16 %v704, %v691
  %v1082 = vpack.c.b16 %v705, %v692
  %v1083 = vpack.c.b16 %v719, %v706
  %v1084 = vpack.c.b16 %v720, %v707
  %v1085 = vpack.c.b16 %v721, %v708
  %v1086 = vpack.c.b16 %v722, %v709
  %v1087 = vpack.c.b16 %v723, %v710
  %v1088 = vpack.c.b16 %v724, %v711
  %v1089 = vpack.c.b16 %v725, %v712
  %v1090 = vpack.c.b16 %v726, %v713
  %v1091 = vpack.c.b16 %v727, %v714
  %v1092 = vpack.c.b16 %v728, %v715
  %v1093 = vpack.c.b16 %v729, %v716
  %v1094 = vpack.c.b16 %v730, %v717
  %v1095 = vpack.c.b16 %v731, %v718
  %v1096 = vpack.c.b16 %v745, %v732
  %v1097 = vpack.c.b16 %v746, %v733
  %v1098 = vpack.c.b16 %v747, %v734
  %v1099 = vpack.c.b16 %v748, %v735
  %v1100 = vpack.c.b16 %v749, %v736
  %v1101 = vpack.c.b16 %v750, %v737
  %v1102 = vpack.c.b16 %v751, %v738
  %v1103 = vpack.c.b16 %v752, %v739
  %v1104 = vpack.c.b16 %v753, %v740
  %v1105 = vpack.c.b16 %v754, %v741
  %v1106 = vpack.c.b16 %v755, %v742
  %v1107 = vpack.c.b16 %v756, %v743
  %v1108 = vpack.c.b16 %v757, %v744
  %v1109 = vpack.c.b16 %v771, %v758
  %v1110 = vpack.c.b16 %v772, %v759
  %v1111 = vpack.c.b16 %v773, %v760
  %v1112 = vpack.c.b16 %v774, %v761
  %v1113 = vpack.c.b16 %v775, %v762
  %v1114 = vpack.c.b16 %v776, %v763
  %v1115 = vpack.c.b16 %v777, %v764
  %v1116 = vpack.c.b16 %v778, %v765
  %v1117 = vpack.c.b16 %v779, %v766
  %v1118 = vpack.c.b16 %v780, %v767
  %v1119 = vpack.c.b16 %v781, %v768
  %v1120 = vpack.c.b16 %v782, %v769
  %v1121 = vpack.c.b16 %v783, %v770
  %v1122 = vpack.c.b16 %v797, %v784
  %v1123 = vpack.c.b16 %v798, %v785
  %v1124 = vpack.c.b16 %v799, %v786
  %v1125 = vpack.c.b16 %v800, %v787
  %v1126 = vpack.c.b16 %v801, %v788
  %v1127 = vpack.c.b16 %v802, %v789
  %v1128 = vpack.c.b16 %v803, %v790
  %v1129 = vpack.c.b16 %v804, %v791
  %v1130 = vpack.c.b16 %v805, %v792
  %v1131 = vpack.c.b16 %v806, %v793
  %v1132 = vpack.c.b16 %v807, %v794
  %v1133 = vpack.c.b16 %v808, %v795
  %v1134 = vpack.c.b16 %v809, %v796
  %v1135 = vpack.c.b16 %v823, %v810
  %v1136 = vpack.c.b16 %v824, %v811
  %v1137 = vpack.c.b16 %v825, %v812
  %v1138 = vpack.c.b16 %v826, %v813
  %v1139 = vpack.c.b16 %v827, %v814
  %v1140 = vpack.c.b16 %v828, %v815
  %v1141 = vpack.c.b16 %v829, %v816
  %v1142 = vpack.c.b16 %v830, %v817
  %v1143 = vpack.c.b16 %v831, %v818
  %v1144 = vpack.c.b16 %v832, %v819
  %v1145 = vpack.c.b16 %v833, %v820
  %v1146 = vpack.c.b16 %v834, %v821
  %v1147 = vpack.c.b16 %v835, %v822
  %v1148 = vpack.c.b16 %v849, %v836
  %v1149 = vpack.c.b16 %v850, %v837
  %v1150 = vpack.c.b16 %v851, %v838
  %v1151 = vpack.c.b16 %v852, %v839
  %v1152 = vpack.c.b16 %v853, %v840
  %v1153 = vpack.c.b16 %v854, %v841
  %v1154 = vpack.c.b16 %v855, %v842
  %v1155 = vpack.c.b16 %v856, %v843
  %v1156 = vpack.c.b16 %v857, %v844
  %v1157 = vpack.c.b16 %v858, %v845
  %v1158 = vpack.c.b16 %v859, %v846
  %v1159 = vpack.c.b16 %v860, %v847
  %v1160 = vpack.c.b16 %v861, %v848
  %v1161 = vpack.c.b16 %v875, %v862
  %v1162 = vpack.c.b16 %v876, %v863
  %v1163 = vpack.c.b16 %v877, %v864
  %v1164 = vpack.c.b16 %v878, %v865
  %v1165 = vpack.c.b16 %v879, %v866
  %v1166 = vpack.c.b16 %v880, %v867
  %v1167 = vpack.c.b16 %v881, %v868
  %v1168 = vpack.c.b16 %v882, %v869
  %v1169 = vpack.c.b16 %v883, %v870
  %v1170 = vpack.c.b16 %v884, %v871
  %v1171 = vpack.c.b16 %v885, %v872
  %v1172 = vpack.c.b16 %v886, %v873
  %v1173 = vpack.c.b16 %v887, %v874
  %v1174 = vpack.c.b16 %v901, %v888
  %v1175 = vpack.c.b16 %v902, %v889
  %v1176 = vpack.c.b16 %v903, %v890
  %v1177 = vpack.c.b16 %v904, %v891
  %v1178 = vpack.c.b16 %v905, %v892
  %v1179 = vpack.c.b16 %v906, %v893
  %v1180 = vpack.c.b16 %v907, %v894
  %v1181 = vpack.c.b16 %v908, %v895
  %v1182 = vpack.c.b16 %v909, %v896
  %v1183 = vpack.c.b16 %v910, %v897
  %v1184 = vpack.c.b16 %v911, %v898
  %v1185 = vpack.c.b16 %v912, %v899
  %v1186 = vpack.c.b16 %v913, %v900
  %v1187 = vpack.c.b16 %v927, %v914
  %v1188 = vpack.c.b16 %v928, %v915
  %v1189 = vpack.c.b16 %v929, %v916
  %v1190 = vpack.c.b16 %v930, %v917
  %v1191 = vpack.c.b16 %v931, %v918
  %v1192 = vpack.c.b16 %v932, %v919
  %v1193 = vpack.c.b16 %v933, %v920
  %v1194 = vpack.c.b16 %v934, %v921
  %v1195 = vpack.c.b16 %v935, %v922
  %v1196 = vpack.c.b16 %v936, %v923
  %v1197 = vpack.c.b16 %v937, %v924
  %v1198 = vpack.c.b16 %v938, %v925
  %v1199 = vpack.c.b16 %v939, %v926
  %v1200 = vpack.c.b16 %v953, %v940
  %v1201 = vpack.c.b16 %v954, %v941
  %v1202 = vpack.c.b16 %v955, %v942
  %v1203 = vpack.c.b16 %v956, %v943
  %v1204 = vpack.c.b16 %v957, %v944
  %v1205 = vpack.c.b16 %v958, %v945
  %v1206 = vpack.c.b16 %v959, %v946
  %v1207 = vpack.c.b16 %v960, %v947
  %v1208 = vpack.c.b16 %v961, %v948
  %v1209 = vpack.c.b16 %v962, %v949
  %v1210 = vpack.c.b16 %v963, %v950
  %v1211 = vpack.c.b16 %v964, %v951
  %v1212 = vpack.c.b16 %v965, %v952
  %v1213 = vpack.c.b16 %v979, %v966
  %v1214 = vpack.c.b16 %v980, %v967
  %v1215 = vpack.c.b16 %v981, %v968
  %v1216 = vpack.c.b16 %v982, %v969
  %v1217 = vpack.c.b16 %v983, %v970
  %v1218 = vpack.c.b16 %v984, %v971
  %v1219 = vpack.c.b16 %v985, %v972
  %v1220 = vpack.c.b16 %v986, %v973
  %v1221 = vpack.c.b16 %v987, %v974
  %v1222 = vpack.c.b16 %v988, %v975
  %v1223 = vpack.c.b16 %v989, %v976
  %v1224 = vpack.c.b16 %v990, %v977
  %v1225 = vpack.c.b16 %v991, %v978
  %v1226 = vpack.c.b16 %v1005, %v992
  %v1227 = vpack.c.b16 %v1006, %v993
  %v1228 = vpack.c.b16 %v1007, %v994
  %v1229 = vpack.c.b16 %v1008, %v995
  %v1230 = vpack.c.b16 %v1009, %v996
  %v1231 = vpack.c.b16 %v1010, %v997
  %v1232 = vpack.c.b16 %v1011, %v998
  %v1233 = vpack.c.b16 %v1012, %v999
  %v1234 = vpack.c.b16 %v1013, %v1000
  %v1235 = vpack.c.b16 %v1014, %v1001
  %v1236 = vpack.c.b16 %v1015, %v1002
  %v1237 = vpack.c.b16 %v1016, %v1003
  %v1238 = vpack.c.b16 %v1017, %v1004
  %v1239 = vpack.c.b16 %v1031, %v1018
  %v1240 = vpack.c.b16 %v1032, %v1019
  %v1241 = vpack.c.b16 %v1033, %v1020
  %v1242 = vpack.c.b16 %v1034, %v1021
  %v1243 = vpack.c.b16 %v1035, %v1022
  %v1244 = vpack.c.b16 %v1036, %v1023
  %v1245 = vpack.c.b16 %v1037, %v1024
  %v1246 = vpack.c.b16 %v1038, %v1025
  %v1247 = vpack.c.b16 %v1039, %v1026
  %v1248 = vpack.c.b16 %v1040, %v1027
  %v1249 = vpack.c.b16 %v1041, %v1028
  %v1250 = vpack.c.b16 %v1042, %v1029
  %v1251 = vpack.c.b16 %v1043, %v1030
  %1460 = vmatprep.subr.bf16.mxu0 %v1045
  %1461 = vmatpush1.bf16.msra.mxu0 %v1044
  %1462 = vmatprep.subr.bf16.mxu0 %v1058
  %1463 = vmatpush1.bf16.msra.mxu0 %v1057
  %1464 = vmatprep.subr.bf16.mxu0 %v1071
  %1465 = vmatpush1.bf16.msra.mxu0 %v1070
  %1466 = vmatprep.subr.bf16.mxu0 %v1084
  %1467 = vmatpush1.bf16.msra.mxu0 %v1083
  %1468 = vmatprep.subr.bf16.mxu0 %v1097
  %1469 = vmatpush1.bf16.msra.mxu0 %v1096
  %1470 = vmatprep.subr.bf16.mxu0 %v1110
  %1471 = vmatpush1.bf16.msra.mxu0 %v1109
  %1472 = vmatprep.subr.bf16.mxu0 %v1123
  %1473 = vmatpush1.bf16.msra.mxu0 %v1122
  %1474 = vmatprep.subr.bf16.mxu0 %v1136
  %1475 = vmatpush1.bf16.msra.mxu0 %v1135
  %1476 = vmatprep.subr.bf16.mxu0 %v1149
  %1477 = vmatpush1.bf16.msra.mxu0 %v1148
  %1478 = vmatprep.subr.bf16.mxu0 %v1162
  %1479 = vmatpush1.bf16.msra.mxu0 %v1161
  %1480 = vmatprep.subr.bf16.mxu0 %v1175
  %1481 = vmatpush1.bf16.msra.mxu0 %v1174
  %1482 = vmatprep.subr.bf16.mxu0 %v1188
  %1483 = vmatpush1.bf16.msra.mxu0 %v1187
  %1484 = vmatprep.subr.bf16.mxu0 %v1201
  %1485 = vmatpush1.bf16.msra.mxu0 %v1200
  %1486 = vmatprep.subr.bf16.mxu0 %v1214
  %1487 = vmatpush1.bf16.msra.mxu0 %v1213
  %1488 = vmatprep.subr.bf16.mxu0 %v1227
  %1489 = vmatpush1.bf16.msra.mxu0 %v1226
  %1490 = vmatprep.subr.bf16.mxu0 %v1240
  %1491 = vmatpush1.bf16.msra.mxu0 %v1239
  %1492 = vmatprep.mubr.bf16.mxu0 %v373
  %1493 = vmatmul.mubr.bf16.gmra.mrb[0].mxu0 %v372
  %v1494 = vpop.f32.mrb[0].mxu0
  %v1495 = vadd.f32 %v262, %v1494
  %v1496 = vpop.f32.mrb[0].mxu0
  %v1497 = vadd.f32 %v266, %v1496
  %v1498 = vpop.f32.mrb[0].mxu0
  %v1499 = vadd.f32 %v262, %v1498
  %v1500 = vpop.f32.mrb[0].mxu0
  %v1501 = vadd.f32 %v266, %v1500
  %1502 = vmatprep.mubr.bf16.mxu0 %v375
  %1503 = vmatmul.mubr.bf16.gmra.mrb[0].mxu0 %v374
  %v1504 = vpop.f32.mrb[0].mxu0
  %v1505 = vadd.f32 %v262, %v1504
  %v1506 = vpop.f32.mrb[0].mxu0
  %v1507 = vadd.f32 %v266, %v1506
  %v1508 = vpop.f32.mrb[0].mxu0
  %v1509 = vadd.f32 %v262, %v1508
  %v1510 = vpop.f32.mrb[0].mxu0
  %v1511 = vadd.f32 %v266, %v1510
  %1512 = vmatprep.mubr.bf16.mxu0 %v377
  %1513 = vmatmul.mubr.bf16.gmra.mrb[0].mxu0 %v376
  %v1514 = vpop.f32.mrb[0].mxu0
  %v1515 = vadd.f32 %v262, %v1514
  %v1516 = vpop.f32.mrb[0].mxu0
  %v1517 = vadd.f32 %v266, %v1516
  %v1518 = vpop.f32.mrb[0].mxu0
  %v1519 = vadd.f32 %v262, %v1518
  %v1520 = vpop.f32.mrb[0].mxu0
  %v1521 = vadd.f32 %v266, %v1520
  %1522 = vmatprep.mubr.bf16.mxu0 %v379
  %1523 = vmatmul.mubr.bf16.gmra.mrb[0].mxu0 %v378
  %v1524 = vpop.f32.mrb[0].mxu0
  %v1525 = vadd.f32 %v262, %v1524
  %v1526 = vpop.f32.mrb[0].mxu0
  %v1527 = vadd.f32 %v266, %v1526
  %v1528 = vpop.f32.mrb[0].mxu0
  %v1529 = vadd.f32 %v262, %v1528
  %v1530 = vpop.f32.mrb[0].mxu0
  %v1531 = vadd.f32 %v266, %v1530
  %1532 = vmatprep.mubr.bf16.mxu0 %v381
  %1533 = vmatmul.mubr.bf16.gmra.mrb[0].mxu0 %v380
  %v1534 = vpop.f32.mrb[0].mxu0
  %v1535 = vadd.f32 %v262, %v1534
  %v1536 = vpop.f32.mrb[0].mxu0
  %v1537 = vadd.f32 %v266, %v1536
  %v1538 = vpop.f32.mrb[0].mxu0
  %v1539 = vadd.f32 %v262, %v1538
  %v1540 = vpop.f32.mrb[0].mxu0
  %v1541 = vadd.f32 %v266, %v1540
  %1542 = vmatprep.mubr.bf16.mxu0 %v383
  %1543 = vmatmul.mubr.bf16.gmra.mrb[0].mxu0 %v382
  %v1544 = vpop.f32.mrb[0].mxu0
  %v1545 = vadd.f32 %v262, %v1544
  %v1546 = vpop.f32.mrb[0].mxu0
  %v1547 = vadd.f32 %v266, %v1546
  %v1548 = vpop.f32.mrb[0].mxu0
  %v1549 = vadd.f32 %v262, %v1548
  %v1550 = vpop.f32.mrb[0].mxu0
  %v1551 = vadd.f32 %v266, %v1550
  %1552 = vmatprep.mubr.bf16.mxu0 %v385
  %1553 = vmatmul.mubr.bf16.gmra.mrb[0].mxu0 %v384
  %v1554 = vpop.f32.mrb[0].mxu0
  %v1555 = vadd.f32 %v262, %v1554
  %v1556 = vpop.f32.mrb[0].mxu0
  %v1557 = vadd.f32 %v266, %v1556
  %v1558 = vpop.f32.mrb[0].mxu0
  %v1559 = vadd.f32 %v262, %v1558
  %v1560 = vpop.f32.mrb[0].mxu0
  %v1561 = vadd.f32 %v266, %v1560
  %1562 = vmatprep.mubr.bf16.mxu0 %v387
  %1563 = vmatmul.mubr.bf16.gmra.mrb[0].mxu0 %v386
  %v1564 = vpop.f32.mrb[0].mxu0
  %v1565 = vadd.f32 %v262, %v1564
  %v1566 = vpop.f32.mrb[0].mxu0
  %v1567 = vadd.f32 %v266, %v1566
  %v1568 = vpop.f32.mrb[0].mxu0
  %v1569 = vadd.f32 %v262, %v1568
  %v1570 = vpop.f32.mrb[0].mxu0
  %v1571 = vadd.f32 %v266, %v1570
  %1572 = vdwg.mxu0
  %1573 = vmatprep.subr.bf16.mxu0 %v1047
  %1574 = vmatpush1.bf16.msra.mxu0 %v1046
  %1575 = vmatprep.subr.bf16.mxu0 %v1060
  %1576 = vmatpush1.bf16.msra.mxu0 %v1059
  %1577 = vmatprep.subr.bf16.mxu0 %v1073
  %1578 = vmatpush1.bf16.msra.mxu0 %v1072
  %1579 = vmatprep.subr.bf16.mxu0 %v1086
  %1580 = vmatpush1.bf16.msra.mxu0 %v1085
  %1581 = vmatprep.subr.bf16.mxu0 %v1099
  %1582 = vmatpush1.bf16.msra.mxu0 %v1098
  %1583 = vmatprep.subr.bf16.mxu0 %v1112
  %1584 = vmatpush1.bf16.msra.mxu0 %v1111
  %1585 = vmatprep.subr.bf16.mxu0 %v1125
  %1586 = vmatpush1.bf16.msra.mxu0 %v1124
  %1587 = vmatprep.subr.bf16.mxu0 %v1138
  %1588 = vmatpush1.bf16.msra.mxu0 %v1137
  %1589 = vmatprep.subr.bf16.mxu0 %v1151
  %1590 = vmatpush1.bf16.msra.mxu0 %v1150
  %1591 = vmatprep.subr.bf16.mxu0 %v1164
  %1592 = vmatpush1.bf16.msra.mxu0 %v1163
  %1593 = vmatprep.subr.bf16.mxu0 %v1177
  %1594 = vmatpush1.bf16.msra.mxu0 %v1176
  %1595 = vmatprep.subr.bf16.mxu0 %v1190
  %1596 = vmatpush1.bf16.msra.mxu0 %v1189
  %1597 = vmatprep.subr.bf16.mxu0 %v1203
  %1598 = vmatpush1.bf16.msra.mxu0 %v1202
  %1599 = vmatprep.subr.bf16.mxu0 %v1216
  %1600 = vmatpush1.bf16.msra.mxu0 %v1215
  %1601 = vmatprep.subr.bf16.mxu0 %v1229
  %1602 = vmatpush1.bf16.msra.mxu0 %v1228
  %1603 = vmatprep.subr.bf16.mxu0 %v1242
  %1604 = vmatpush1.bf16.msra.mxu0 %v1241
  %1605 = vmatprep.mubr.bf16.mxu0 %v373
  %1606 = vmatmul.mubr.bf16.gmra.mrb[0].mxu0 %v372
  %v1607 = vpop.f32.mrb[0].mxu0
  %v1608 = vadd.f32 %v270, %v1607
  %v1609 = vpop.f32.mrb[0].mxu0
  %v1610 = vadd.f32 %v274, %v1609
  %v1611 = vpop.f32.mrb[0].mxu0
  %v1612 = vadd.f32 %v270, %v1611
  %v1613 = vpop.f32.mrb[0].mxu0
  %v1614 = vadd.f32 %v274, %v1613
  %1615 = vmatprep.mubr.bf16.mxu0 %v375
  %1616 = vmatmul.mubr.bf16.gmra.mrb[0].mxu0 %v374
  %v1617 = vpop.f32.mrb[0].mxu0
  %v1618 = vadd.f32 %v270, %v1617
  %v1619 = vpop.f32.mrb[0].mxu0
  %v1620 = vadd.f32 %v274, %v1619
  %v1621 = vpop.f32.mrb[0].mxu0
  %v1622 = vadd.f32 %v270, %v1621
  %v1623 = vpop.f32.mrb[0].mxu0
  %v1624 = vadd.f32 %v274, %v1623
  %1625 = vmatprep.mubr.bf16.mxu0 %v377
  %1626 = vmatmul.mubr.bf16.gmra.mrb[0].mxu0 %v376
  %v1627 = vpop.f32.mrb[0].mxu0
  %v1628 = vadd.f32 %v270, %v1627
  %v1629 = vpop.f32.mrb[0].mxu0
  %v1630 = vadd.f32 %v274, %v1629
  %v1631 = vpop.f32.mrb[0].mxu0
  %v1632 = vadd.f32 %v270, %v1631
  %v1633 = vpop.f32.mrb[0].mxu0
  %v1634 = vadd.f32 %v274, %v1633
  %1635 = vmatprep.mubr.bf16.mxu0 %v379
  %1636 = vmatmul.mubr.bf16.gmra.mrb[0].mxu0 %v378
  %v1637 = vpop.f32.mrb[0].mxu0
  %v1638 = vadd.f32 %v270, %v1637
  %v1639 = vpop.f32.mrb[0].mxu0
  %v1640 = vadd.f32 %v274, %v1639
  %v1641 = vpop.f32.mrb[0].mxu0
  %v1642 = vadd.f32 %v270, %v1641
  %v1643 = vpop.f32.mrb[0].mxu0
  %v1644 = vadd.f32 %v274, %v1643
  %1645 = vmatprep.mubr.bf16.mxu0 %v381
  %1646 = vmatmul.mubr.bf16.gmra.mrb[0].mxu0 %v380
  %v1647 = vpop.f32.mrb[0].mxu0
  %v1648 = vadd.f32 %v270, %v1647
  %v1649 = vpop.f32.mrb[0].mxu0
  %v1650 = vadd.f32 %v274, %v1649
  %v1651 = vpop.f32.mrb[0].mxu0
  %v1652 = vadd.f32 %v270, %v1651
  %v1653 = vpop.f32.mrb[0].mxu0
  %v1654 = vadd.f32 %v274, %v1653
  %1655 = vmatprep.mubr.bf16.mxu0 %v383
  %1656 = vmatmul.mubr.bf16.gmra.mrb[0].mxu0 %v382
  %v1657 = vpop.f32.mrb[0].mxu0
  %v1658 = vadd.f32 %v270, %v1657
  %v1659 = vpop.f32.mrb[0].mxu0
  %v1660 = vadd.f32 %v274, %v1659
  %v1661 = vpop.f32.mrb[0].mxu0
  %v1662 = vadd.f32 %v270, %v1661
  %v1663 = vpop.f32.mrb[0].mxu0
  %v1664 = vadd.f32 %v274, %v1663
  %1665 = vmatprep.mubr.bf16.mxu0 %v385
  %1666 = vmatmul.mubr.bf16.gmra.mrb[0].mxu0 %v384
  %v1667 = vpop.f32.mrb[0].mxu0
  %v1668 = vadd.f32 %v270, %v1667
  %v1669 = vpop.f32.mrb[0].mxu0
  %v1670 = vadd.f32 %v274, %v1669
  %v1671 = vpop.f32.mrb[0].mxu0
  %v1672 = vadd.f32 %v270, %v1671
  %v1673 = vpop.f32.mrb[0].mxu0
  %v1674 = vadd.f32 %v274, %v1673
  %1675 = vmatprep.mubr.bf16.mxu0 %v387
  %1676 = vmatmul.mubr.bf16.gmra.mrb[0].mxu0 %v386
  %v1677 = vpop.f32.mrb[0].mxu0
  %v1678 = vadd.f32 %v270, %v1677
  %v1679 = vpop.f32.mrb[0].mxu0
  %v1680 = vadd.f32 %v274, %v1679
  %v1681 = vpop.f32.mrb[0].mxu0
  %v1682 = vadd.f32 %v270, %v1681
  %v1683 = vpop.f32.mrb[0].mxu0
  %v1684 = vadd.f32 %v274, %v1683
  %1685 = vdwg.mxu0
  %1686 = vmatprep.subr.bf16.mxu0 %v1049
  %1687 = vmatpush1.bf16.msra.mxu0 %v1048
  %1688 = vmatprep.subr.bf16.mxu0 %v1062
  %1689 = vmatpush1.bf16.msra.mxu0 %v1061
  %1690 = vmatprep.subr.bf16.mxu0 %v1075
  %1691 = vmatpush1.bf16.msra.mxu0 %v1074
  %1692 = vmatprep.subr.bf16.mxu0 %v1088
  %1693 = vmatpush1.bf16.msra.mxu0 %v1087
  %1694 = vmatprep.subr.bf16.mxu0 %v1101
  %1695 = vmatpush1.bf16.msra.mxu0 %v1100
  %1696 = vmatprep.subr.bf16.mxu0 %v1114
  %1697 = vmatpush1.bf16.msra.mxu0 %v1113
  %1698 = vmatprep.subr.bf16.mxu0 %v1127
  %1699 = vmatpush1.bf16.msra.mxu0 %v1126
  %1700 = vmatprep.subr.bf16.mxu0 %v1140
  %1701 = vmatpush1.bf16.msra.mxu0 %v1139
  %1702 = vmatprep.subr.bf16.mxu0 %v1153
  %1703 = vmatpush1.bf16.msra.mxu0 %v1152
  %1704 = vmatprep.subr.bf16.mxu0 %v1166
  %1705 = vmatpush1.bf16.msra.mxu0 %v1165
  %1706 = vmatprep.subr.bf16.mxu0 %v1179
  %1707 = vmatpush1.bf16.msra.mxu0 %v1178
  %1708 = vmatprep.subr.bf16.mxu0 %v1192
  %1709 = vmatpush1.bf16.msra.mxu0 %v1191
  %1710 = vmatprep.subr.bf16.mxu0 %v1205
  %1711 = vmatpush1.bf16.msra.mxu0 %v1204
  %1712 = vmatprep.subr.bf16.mxu0 %v1218
  %1713 = vmatpush1.bf16.msra.mxu0 %v1217
  %1714 = vmatprep.subr.bf16.mxu0 %v1231
  %1715 = vmatpush1.bf16.msra.mxu0 %v1230
  %1716 = vmatprep.subr.bf16.mxu0 %v1244
  %1717 = vmatpush1.bf16.msra.mxu0 %v1243
  %1718 = vmatprep.mubr.bf16.mxu0 %v373
  %1719 = vmatmul.mubr.bf16.gmra.mrb[0].mxu0 %v372
  %v1720 = vpop.f32.mrb[0].mxu0
  %v1721 = vadd.f32 %v278, %v1720
  %v1722 = vpop.f32.mrb[0].mxu0
  %v1723 = vadd.f32 %v282, %v1722
  %v1724 = vpop.f32.mrb[0].mxu0
  %v1725 = vadd.f32 %v278, %v1724
  %v1726 = vpop.f32.mrb[0].mxu0
  %v1727 = vadd.f32 %v282, %v1726
  %1728 = vmatprep.mubr.bf16.mxu0 %v375
  %1729 = vmatmul.mubr.bf16.gmra.mrb[0].mxu0 %v374
  %v1730 = vpop.f32.mrb[0].mxu0
  %v1731 = vadd.f32 %v278, %v1730
  %v1732 = vpop.f32.mrb[0].mxu0
  %v1733 = vadd.f32 %v282, %v1732
  %v1734 = vpop.f32.mrb[0].mxu0
  %v1735 = vadd.f32 %v278, %v1734
  %v1736 = vpop.f32.mrb[0].mxu0
  %v1737 = vadd.f32 %v282, %v1736
  %1738 = vmatprep.mubr.bf16.mxu0 %v377
  %1739 = vmatmul.mubr.bf16.gmra.mrb[0].mxu0 %v376
  %v1740 = vpop.f32.mrb[0].mxu0
  %v1741 = vadd.f32 %v278, %v1740
  %v1742 = vpop.f32.mrb[0].mxu0
  %v1743 = vadd.f32 %v282, %v1742
  %v1744 = vpop.f32.mrb[0].mxu0
  %v1745 = vadd.f32 %v278, %v1744
  %v1746 = vpop.f32.mrb[0].mxu0
  %v1747 = vadd.f32 %v282, %v1746
  %1748 = vmatprep.mubr.bf16.mxu0 %v379
  %1749 = vmatmul.mubr.bf16.gmra.mrb[0].mxu0 %v378
  %v1750 = vpop.f32.mrb[0].mxu0
  %v1751 = vadd.f32 %v278, %v1750
  %v1752 = vpop.f32.mrb[0].mxu0
  %v1753 = vadd.f32 %v282, %v1752
  %v1754 = vpop.f32.mrb[0].mxu0
  %v1755 = vadd.f32 %v278, %v1754
  %v1756 = vpop.f32.mrb[0].mxu0
  %v1757 = vadd.f32 %v282, %v1756
  %1758 = vmatprep.mubr.bf16.mxu0 %v381
  %1759 = vmatmul.mubr.bf16.gmra.mrb[0].mxu0 %v380
  %v1760 = vpop.f32.mrb[0].mxu0
  %v1761 = vadd.f32 %v278, %v1760
  %v1762 = vpop.f32.mrb[0].mxu0
  %v1763 = vadd.f32 %v282, %v1762
  %v1764 = vpop.f32.mrb[0].mxu0
  %v1765 = vadd.f32 %v278, %v1764
  %v1766 = vpop.f32.mrb[0].mxu0
  %v1767 = vadd.f32 %v282, %v1766
  %1768 = vmatprep.mubr.bf16.mxu0 %v383
  %1769 = vmatmul.mubr.bf16.gmra.mrb[0].mxu0 %v382
  %v1770 = vpop.f32.mrb[0].mxu0
  %v1771 = vadd.f32 %v278, %v1770
  %v1772 = vpop.f32.mrb[0].mxu0
  %v1773 = vadd.f32 %v282, %v1772
  %v1774 = vpop.f32.mrb[0].mxu0
  %v1775 = vadd.f32 %v278, %v1774
  %v1776 = vpop.f32.mrb[0].mxu0
  %v1777 = vadd.f32 %v282, %v1776
  %1778 = vmatprep.mubr.bf16.mxu0 %v385
  %1779 = vmatmul.mubr.bf16.gmra.mrb[0].mxu0 %v384
  %v1780 = vpop.f32.mrb[0].mxu0
  %v1781 = vadd.f32 %v278, %v1780
  %v1782 = vpop.f32.mrb[0].mxu0
  %v1783 = vadd.f32 %v282, %v1782
  %v1784 = vpop.f32.mrb[0].mxu0
  %v1785 = vadd.f32 %v278, %v1784
  %v1786 = vpop.f32.mrb[0].mxu0
  %v1787 = vadd.f32 %v282, %v1786
  %1788 = vmatprep.mubr.bf16.mxu0 %v387
  %1789 = vmatmul.mubr.bf16.gmra.mrb[0].mxu0 %v386
  %v1790 = vpop.f32.mrb[0].mxu0
  %v1791 = vadd.f32 %v278, %v1790
  %v1792 = vpop.f32.mrb[0].mxu0
  %v1793 = vadd.f32 %v282, %v1792
  %v1794 = vpop.f32.mrb[0].mxu0
  %v1795 = vadd.f32 %v278, %v1794
  %v1796 = vpop.f32.mrb[0].mxu0
  %v1797 = vadd.f32 %v282, %v1796
  %1798 = vdwg.mxu0
  %1799 = vmatprep.subr.bf16.mxu0 %v1051
  %1800 = vmatpush1.bf16.msra.mxu0 %v1050
  %1801 = vmatprep.subr.bf16.mxu0 %v1064
  %1802 = vmatpush1.bf16.msra.mxu0 %v1063
  %1803 = vmatprep.subr.bf16.mxu0 %v1077
  %1804 = vmatpush1.bf16.msra.mxu0 %v1076
  %1805 = vmatprep.subr.bf16.mxu0 %v1090
  %1806 = vmatpush1.bf16.msra.mxu0 %v1089
  %1807 = vmatprep.subr.bf16.mxu0 %v1103
  %1808 = vmatpush1.bf16.msra.mxu0 %v1102
  %1809 = vmatprep.subr.bf16.mxu0 %v1116
  %1810 = vmatpush1.bf16.msra.mxu0 %v1115
  %1811 = vmatprep.subr.bf16.mxu0 %v1129
  %1812 = vmatpush1.bf16.msra.mxu0 %v1128
  %1813 = vmatprep.subr.bf16.mxu0 %v1142
  %1814 = vmatpush1.bf16.msra.mxu0 %v1141
  %1815 = vmatprep.subr.bf16.mxu0 %v1155
  %1816 = vmatpush1.bf16.msra.mxu0 %v1154
  %1817 = vmatprep.subr.bf16.mxu0 %v1168
  %1818 = vmatpush1.bf16.msra.mxu0 %v1167
  %1819 = vmatprep.subr.bf16.mxu0 %v1181
  %1820 = vmatpush1.bf16.msra.mxu0 %v1180
  %1821 = vmatprep.subr.bf16.mxu0 %v1194
  %1822 = vmatpush1.bf16.msra.mxu0 %v1193
  %1823 = vmatprep.subr.bf16.mxu0 %v1207
  %1824 = vmatpush1.bf16.msra.mxu0 %v1206
  %1825 = vmatprep.subr.bf16.mxu0 %v1220
  %1826 = vmatpush1.bf16.msra.mxu0 %v1219
  %1827 = vmatprep.subr.bf16.mxu0 %v1233
  %1828 = vmatpush1.bf16.msra.mxu0 %v1232
  %1829 = vmatprep.subr.bf16.mxu0 %v1246
  %1830 = vmatpush1.bf16.msra.mxu0 %v1245
  %1831 = vmatprep.mubr.bf16.mxu0 %v373
  %1832 = vmatmul.mubr.bf16.gmra.mrb[0].mxu0 %v372
  %v1833 = vpop.f32.mrb[0].mxu0
  %v1834 = vadd.f32 %v286, %v1833
  %v1835 = vpop.f32.mrb[0].mxu0
  %v1836 = vadd.f32 %v290, %v1835
  %v1837 = vpop.f32.mrb[0].mxu0
  %v1838 = vadd.f32 %v286, %v1837
  %v1839 = vpop.f32.mrb[0].mxu0
  %v1840 = vadd.f32 %v290, %v1839
  %1841 = vmatprep.mubr.bf16.mxu0 %v375
  %1842 = vmatmul.mubr.bf16.gmra.mrb[0].mxu0 %v374
  %v1843 = vpop.f32.mrb[0].mxu0
  %v1844 = vadd.f32 %v286, %v1843
  %v1845 = vpop.f32.mrb[0].mxu0
  %v1846 = vadd.f32 %v290, %v1845
  %v1847 = vpop.f32.mrb[0].mxu0
  %v1848 = vadd.f32 %v286, %v1847
  %v1849 = vpop.f32.mrb[0].mxu0
  %v1850 = vadd.f32 %v290, %v1849
  %1851 = vmatprep.mubr.bf16.mxu0 %v377
  %1852 = vmatmul.mubr.bf16.gmra.mrb[0].mxu0 %v376
  %v1853 = vpop.f32.mrb[0].mxu0
  %v1854 = vadd.f32 %v286, %v1853
  %v1855 = vpop.f32.mrb[0].mxu0
  %v1856 = vadd.f32 %v290, %v1855
  %v1857 = vpop.f32.mrb[0].mxu0
  %v1858 = vadd.f32 %v286, %v1857
  %v1859 = vpop.f32.mrb[0].mxu0
  %v1860 = vadd.f32 %v290, %v1859
  %1861 = vmatprep.mubr.bf16.mxu0 %v379
  %1862 = vmatmul.mubr.bf16.gmra.mrb[0].mxu0 %v378
  %v1863 = vpop.f32.mrb[0].mxu0
  %v1864 = vadd.f32 %v286, %v1863
  %v1865 = vpop.f32.mrb[0].mxu0
  %v1866 = vadd.f32 %v290, %v1865
  %v1867 = vpop.f32.mrb[0].mxu0
  %v1868 = vadd.f32 %v286, %v1867
  %v1869 = vpop.f32.mrb[0].mxu0
  %v1870 = vadd.f32 %v290, %v1869
  %1871 = vmatprep.mubr.bf16.mxu0 %v381
  %1872 = vmatmul.mubr.bf16.gmra.mrb[0].mxu0 %v380
  %v1873 = vpop.f32.mrb[0].mxu0
  %v1874 = vadd.f32 %v286, %v1873
  %v1875 = vpop.f32.mrb[0].mxu0
  %v1876 = vadd.f32 %v290, %v1875
  %v1877 = vpop.f32.mrb[0].mxu0
  %v1878 = vadd.f32 %v286, %v1877
  %v1879 = vpop.f32.mrb[0].mxu0
  %v1880 = vadd.f32 %v290, %v1879
  %1881 = vmatprep.mubr.bf16.mxu0 %v383
  %1882 = vmatmul.mubr.bf16.gmra.mrb[0].mxu0 %v382
  %v1883 = vpop.f32.mrb[0].mxu0
  %v1884 = vadd.f32 %v286, %v1883
  %v1885 = vpop.f32.mrb[0].mxu0
  %v1886 = vadd.f32 %v290, %v1885
  %v1887 = vpop.f32.mrb[0].mxu0
  %v1888 = vadd.f32 %v286, %v1887
  %v1889 = vpop.f32.mrb[0].mxu0
  %v1890 = vadd.f32 %v290, %v1889
  %1891 = vmatprep.mubr.bf16.mxu0 %v385
  %1892 = vmatmul.mubr.bf16.gmra.mrb[0].mxu0 %v384
  %v1893 = vpop.f32.mrb[0].mxu0
  %v1894 = vadd.f32 %v286, %v1893
  %v1895 = vpop.f32.mrb[0].mxu0
  %v1896 = vadd.f32 %v290, %v1895
  %v1897 = vpop.f32.mrb[0].mxu0
  %v1898 = vadd.f32 %v286, %v1897
  %v1899 = vpop.f32.mrb[0].mxu0
  %v1900 = vadd.f32 %v290, %v1899
  %1901 = vmatprep.mubr.bf16.mxu0 %v387
  %1902 = vmatmul.mubr.bf16.gmra.mrb[0].mxu0 %v386
  %v1903 = vpop.f32.mrb[0].mxu0
  %v1904 = vadd.f32 %v286, %v1903
  %v1905 = vpop.f32.mrb[0].mxu0
  %v1906 = vadd.f32 %v290, %v1905
  %v1907 = vpop.f32.mrb[0].mxu0
  %v1908 = vadd.f32 %v286, %v1907
  %v1909 = vpop.f32.mrb[0].mxu0
  %v1910 = vadd.f32 %v290, %v1909
  %1911 = vdwg.mxu0
  %1912 = vmatprep.subr.bf16.mxu0 %v1053
  %1913 = vmatpush1.bf16.msra.mxu0 %v1052
  %1914 = vmatprep.subr.bf16.mxu0 %v1066
  %1915 = vmatpush1.bf16.msra.mxu0 %v1065
  %1916 = vmatprep.subr.bf16.mxu0 %v1079
  %1917 = vmatpush1.bf16.msra.mxu0 %v1078
  %1918 = vmatprep.subr.bf16.mxu0 %v1092
  %1919 = vmatpush1.bf16.msra.mxu0 %v1091
  %1920 = vmatprep.subr.bf16.mxu0 %v1105
  %1921 = vmatpush1.bf16.msra.mxu0 %v1104
  %1922 = vmatprep.subr.bf16.mxu0 %v1118
  %1923 = vmatpush1.bf16.msra.mxu0 %v1117
  %1924 = vmatprep.subr.bf16.mxu0 %v1131
  %1925 = vmatpush1.bf16.msra.mxu0 %v1130
  %1926 = vmatprep.subr.bf16.mxu0 %v1144
  %1927 = vmatpush1.bf16.msra.mxu0 %v1143
  %1928 = vmatprep.subr.bf16.mxu0 %v1157
  %1929 = vmatpush1.bf16.msra.mxu0 %v1156
  %1930 = vmatprep.subr.bf16.mxu0 %v1170
  %1931 = vmatpush1.bf16.msra.mxu0 %v1169
  %1932 = vmatprep.subr.bf16.mxu0 %v1183
  %1933 = vmatpush1.bf16.msra.mxu0 %v1182
  %1934 = vmatprep.subr.bf16.mxu0 %v1196
  %1935 = vmatpush1.bf16.msra.mxu0 %v1195
  %1936 = vmatprep.subr.bf16.mxu0 %v1209
  %1937 = vmatpush1.bf16.msra.mxu0 %v1208
  %1938 = vmatprep.subr.bf16.mxu0 %v1222
  %1939 = vmatpush1.bf16.msra.mxu0 %v1221
  %1940 = vmatprep.subr.bf16.mxu0 %v1235
  %1941 = vmatpush1.bf16.msra.mxu0 %v1234
  %1942 = vmatprep.subr.bf16.mxu0 %v1248
  %1943 = vmatpush1.bf16.msra.mxu0 %v1247
  %1944 = vmatprep.mubr.bf16.mxu0 %v373
  %1945 = vmatmul.mubr.bf16.gmra.mrb[0].mxu0 %v372
  %v1946 = vpop.f32.mrb[0].mxu0
  %v1947 = vadd.f32 %v294, %v1946
  %v1948 = vpop.f32.mrb[0].mxu0
  %v1949 = vadd.f32 %v298, %v1948
  %v1950 = vpop.f32.mrb[0].mxu0
  %v1951 = vadd.f32 %v294, %v1950
  %v1952 = vpop.f32.mrb[0].mxu0
  %v1953 = vadd.f32 %v298, %v1952
  %1954 = vmatprep.mubr.bf16.mxu0 %v375
  %1955 = vmatmul.mubr.bf16.gmra.mrb[0].mxu0 %v374
  %v1956 = vpop.f32.mrb[0].mxu0
  %v1957 = vadd.f32 %v294, %v1956
  %v1958 = vpop.f32.mrb[0].mxu0
  %v1959 = vadd.f32 %v298, %v1958
  %v1960 = vpop.f32.mrb[0].mxu0
  %v1961 = vadd.f32 %v294, %v1960
  %v1962 = vpop.f32.mrb[0].mxu0
  %v1963 = vadd.f32 %v298, %v1962
  %1964 = vmatprep.mubr.bf16.mxu0 %v377
  %1965 = vmatmul.mubr.bf16.gmra.mrb[0].mxu0 %v376
  %v1966 = vpop.f32.mrb[0].mxu0
  %v1967 = vadd.f32 %v294, %v1966
  %v1968 = vpop.f32.mrb[0].mxu0
  %v1969 = vadd.f32 %v298, %v1968
  %v1970 = vpop.f32.mrb[0].mxu0
  %v1971 = vadd.f32 %v294, %v1970
  %v1972 = vpop.f32.mrb[0].mxu0
  %v1973 = vadd.f32 %v298, %v1972
  %1974 = vmatprep.mubr.bf16.mxu0 %v379
  %1975 = vmatmul.mubr.bf16.gmra.mrb[0].mxu0 %v378
  %v1976 = vpop.f32.mrb[0].mxu0
  %v1977 = vadd.f32 %v294, %v1976
  %v1978 = vpop.f32.mrb[0].mxu0
  %v1979 = vadd.f32 %v298, %v1978
  %v1980 = vpop.f32.mrb[0].mxu0
  %v1981 = vadd.f32 %v294, %v1980
  %v1982 = vpop.f32.mrb[0].mxu0
  %v1983 = vadd.f32 %v298, %v1982
  %1984 = vmatprep.mubr.bf16.mxu0 %v381
  %1985 = vmatmul.mubr.bf16.gmra.mrb[0].mxu0 %v380
  %v1986 = vpop.f32.mrb[0].mxu0
  %v1987 = vadd.f32 %v294, %v1986
  %v1988 = vpop.f32.mrb[0].mxu0
  %v1989 = vadd.f32 %v298, %v1988
  %v1990 = vpop.f32.mrb[0].mxu0
  %v1991 = vadd.f32 %v294, %v1990
  %v1992 = vpop.f32.mrb[0].mxu0
  %v1993 = vadd.f32 %v298, %v1992
  %1994 = vmatprep.mubr.bf16.mxu0 %v383
  %1995 = vmatmul.mubr.bf16.gmra.mrb[0].mxu0 %v382
  %v1996 = vpop.f32.mrb[0].mxu0
  %v1997 = vadd.f32 %v294, %v1996
  %v1998 = vpop.f32.mrb[0].mxu0
  %v1999 = vadd.f32 %v298, %v1998
  %v2000 = vpop.f32.mrb[0].mxu0
  %v2001 = vadd.f32 %v294, %v2000
  %v2002 = vpop.f32.mrb[0].mxu0
  %v2003 = vadd.f32 %v298, %v2002
  %2004 = vmatprep.mubr.bf16.mxu0 %v385
  %2005 = vmatmul.mubr.bf16.gmra.mrb[0].mxu0 %v384
  %v2006 = vpop.f32.mrb[0].mxu0
  %v2007 = vadd.f32 %v294, %v2006
  %v2008 = vpop.f32.mrb[0].mxu0
  %v2009 = vadd.f32 %v298, %v2008
  %v2010 = vpop.f32.mrb[0].mxu0
  %v2011 = vadd.f32 %v294, %v2010
  %v2012 = vpop.f32.mrb[0].mxu0
  %v2013 = vadd.f32 %v298, %v2012
  %2014 = vmatprep.mubr.bf16.mxu0 %v387
  %2015 = vmatmul.mubr.bf16.gmra.mrb[0].mxu0 %v386
  %v2016 = vpop.f32.mrb[0].mxu0
  %v2017 = vadd.f32 %v294, %v2016
  %v2018 = vpop.f32.mrb[0].mxu0
  %v2019 = vadd.f32 %v298, %v2018
  %v2020 = vpop.f32.mrb[0].mxu0
  %v2021 = vadd.f32 %v294, %v2020
  %v2022 = vpop.f32.mrb[0].mxu0
  %v2023 = vadd.f32 %v298, %v2022
  %2024 = vdwg.mxu0
  %2025 = vmatprep.subr.bf16.mxu0 %v1055
  %2026 = vmatpush1.bf16.msra.mxu0 %v1054
  %2027 = vmatprep.subr.bf16.mxu0 %v1068
  %2028 = vmatpush1.bf16.msra.mxu0 %v1067
  %2029 = vmatprep.subr.bf16.mxu0 %v1081
  %2030 = vmatpush1.bf16.msra.mxu0 %v1080
  %2031 = vmatprep.subr.bf16.mxu0 %v1094
  %2032 = vmatpush1.bf16.msra.mxu0 %v1093
  %2033 = vmatprep.subr.bf16.mxu0 %v1107
  %2034 = vmatpush1.bf16.msra.mxu0 %v1106
  %2035 = vmatprep.subr.bf16.mxu0 %v1120
  %2036 = vmatpush1.bf16.msra.mxu0 %v1119
  %2037 = vmatprep.subr.bf16.mxu0 %v1133
  %2038 = vmatpush1.bf16.msra.mxu0 %v1132
  %2039 = vmatprep.subr.bf16.mxu0 %v1146
  %2040 = vmatpush1.bf16.msra.mxu0 %v1145
  %2041 = vmatprep.subr.bf16.mxu0 %v1159
  %2042 = vmatpush1.bf16.msra.mxu0 %v1158
  %2043 = vmatprep.subr.bf16.mxu0 %v1172
  %2044 = vmatpush1.bf16.msra.mxu0 %v1171
  %2045 = vmatprep.subr.bf16.mxu0 %v1185
  %2046 = vmatpush1.bf16.msra.mxu0 %v1184
  %2047 = vmatprep.subr.bf16.mxu0 %v1198
  %2048 = vmatpush1.bf16.msra.mxu0 %v1197
  %2049 = vmatprep.subr.bf16.mxu0 %v1211
  %2050 = vmatpush1.bf16.msra.mxu0 %v1210
  %2051 = vmatprep.subr.bf16.mxu0 %v1224
  %2052 = vmatpush1.bf16.msra.mxu0 %v1223
  %2053 = vmatprep.subr.bf16.mxu0 %v1237
  %2054 = vmatpush1.bf16.msra.mxu0 %v1236
  %2055 = vmatprep.subr.bf16.mxu0 %v1250
  %2056 = vmatpush1.bf16.msra.mxu0 %v1249
  %2057 = vmatprep.mubr.bf16.mxu0 %v373
  %2058 = vmatmul.mubr.bf16.gmra.mrb[0].mxu0 %v372
  %v2059 = vpop.f32.mrb[0].mxu0
  %v2060 = vadd.f32 %v302, %v2059
  %v2061 = vpop.f32.mrb[0].mxu0
  %v2062 = vadd.f32 %v306, %v2061
  %v2063 = vpop.f32.mrb[0].mxu0
  %v2064 = vadd.f32 %v302, %v2063
  %v2065 = vpop.f32.mrb[0].mxu0
  %v2066 = vadd.f32 %v306, %v2065
  %2067 = vmatprep.mubr.bf16.mxu0 %v375
  %2068 = vmatmul.mubr.bf16.gmra.mrb[0].mxu0 %v374
  %v2069 = vpop.f32.mrb[0].mxu0
  %v2070 = vadd.f32 %v302, %v2069
  %v2071 = vpop.f32.mrb[0].mxu0
  %v2072 = vadd.f32 %v306, %v2071
  %v2073 = vpop.f32.mrb[0].mxu0
  %v2074 = vadd.f32 %v302, %v2073
  %v2075 = vpop.f32.mrb[0].mxu0
  %v2076 = vadd.f32 %v306, %v2075
  %2077 = vmatprep.mubr.bf16.mxu0 %v377
  %2078 = vmatmul.mubr.bf16.gmra.mrb[0].mxu0 %v376
  %v2079 = vpop.f32.mrb[0].mxu0
  %v2080 = vadd.f32 %v302, %v2079
  %v2081 = vpop.f32.mrb[0].mxu0
  %v2082 = vadd.f32 %v306, %v2081
  %v2083 = vpop.f32.mrb[0].mxu0
  %v2084 = vadd.f32 %v302, %v2083
  %v2085 = vpop.f32.mrb[0].mxu0
  %v2086 = vadd.f32 %v306, %v2085
  %2087 = vmatprep.mubr.bf16.mxu0 %v379
  %2088 = vmatmul.mubr.bf16.gmra.mrb[0].mxu0 %v378
  %v2089 = vpop.f32.mrb[0].mxu0
  %v2090 = vadd.f32 %v302, %v2089
  %v2091 = vpop.f32.mrb[0].mxu0
  %v2092 = vadd.f32 %v306, %v2091
  %v2093 = vpop.f32.mrb[0].mxu0
  %v2094 = vadd.f32 %v302, %v2093
  %v2095 = vpop.f32.mrb[0].mxu0
  %v2096 = vadd.f32 %v306, %v2095
  %2097 = vmatprep.mubr.bf16.mxu0 %v381
  %2098 = vmatmul.mubr.bf16.gmra.mrb[0].mxu0 %v380
  %v2099 = vpop.f32.mrb[0].mxu0
  %v2100 = vadd.f32 %v302, %v2099
  %v2101 = vpop.f32.mrb[0].mxu0
  %v2102 = vadd.f32 %v306, %v2101
  %v2103 = vpop.f32.mrb[0].mxu0
  %v2104 = vadd.f32 %v302, %v2103
  %v2105 = vpop.f32.mrb[0].mxu0
  %v2106 = vadd.f32 %v306, %v2105
  %2107 = vmatprep.mubr.bf16.mxu0 %v383
  %2108 = vmatmul.mubr.bf16.gmra.mrb[0].mxu0 %v382
  %v2109 = vpop.f32.mrb[0].mxu0
  %v2110 = vadd.f32 %v302, %v2109
  %v2111 = vpop.f32.mrb[0].mxu0
  %v2112 = vadd.f32 %v306, %v2111
  %v2113 = vpop.f32.mrb[0].mxu0
  %v2114 = vadd.f32 %v302, %v2113
  %v2115 = vpop.f32.mrb[0].mxu0
  %v2116 = vadd.f32 %v306, %v2115
  %2117 = vmatprep.mubr.bf16.mxu0 %v385
  %2118 = vmatmul.mubr.bf16.gmra.mrb[0].mxu0 %v384
  %v2119 = vpop.f32.mrb[0].mxu0
  %v2120 = vadd.f32 %v302, %v2119
  %v2121 = vpop.f32.mrb[0].mxu0
  %v2122 = vadd.f32 %v306, %v2121
  %v2123 = vpop.f32.mrb[0].mxu0
  %v2124 = vadd.f32 %v302, %v2123
  %v2125 = vpop.f32.mrb[0].mxu0
  %v2126 = vadd.f32 %v306, %v2125
  %2127 = vmatprep.mubr.bf16.mxu0 %v387
  %2128 = vmatmul.mubr.bf16.gmra.mrb[0].mxu0 %v386
  %v2129 = vpop.f32.mrb[0].mxu0
  %v2130 = vadd.f32 %v302, %v2129
  %v2131 = vpop.f32.mrb[0].mxu0
  %v2132 = vadd.f32 %v306, %v2131
  %v2133 = vpop.f32.mrb[0].mxu0
  %v2134 = vadd.f32 %v302, %v2133
  %v2135 = vpop.f32.mrb[0].mxu0
  %v2136 = vadd.f32 %v306, %v2135
  %2137 = vdwg.mxu0
  %2138 = vmatprep.subr.bf16.mxu0 0
  %2139 = vmatpush1.bf16.msra.mxu0 %v1056
  %2140 = vmatprep.subr.bf16.mxu0 0
  %2141 = vmatpush1.bf16.msra.mxu0 %v1069
  %2142 = vmatprep.subr.bf16.mxu0 0
  %2143 = vmatpush1.bf16.msra.mxu0 %v1082
  %2144 = vmatprep.subr.bf16.mxu0 0
  %2145 = vmatpush1.bf16.msra.mxu0 %v1095
  %2146 = vmatprep.subr.bf16.mxu0 0
  %2147 = vmatpush1.bf16.msra.mxu0 %v1108
  %2148 = vmatprep.subr.bf16.mxu0 0
  %2149 = vmatpush1.bf16.msra.mxu0 %v1121
  %2150 = vmatprep.subr.bf16.mxu0 0
  %2151 = vmatpush1.bf16.msra.mxu0 %v1134
  %2152 = vmatprep.subr.bf16.mxu0 0
  %2153 = vmatpush1.bf16.msra.mxu0 %v1147
  %2154 = vmatprep.subr.bf16.mxu0 0
  %2155 = vmatpush1.bf16.msra.mxu0 %v1160
  %2156 = vmatprep.subr.bf16.mxu0 0
  %2157 = vmatpush1.bf16.msra.mxu0 %v1173
  %2158 = vmatprep.subr.bf16.mxu0 0
  %2159 = vmatpush1.bf16.msra.mxu0 %v1186
  %2160 = vmatprep.subr.bf16.mxu0 0
  %2161 = vmatpush1.bf16.msra.mxu0 %v1199
  %2162 = vmatprep.subr.bf16.mxu0 0
  %2163 = vmatpush1.bf16.msra.mxu0 %v1212
  %2164 = vmatprep.subr.bf16.mxu0 0
  %2165 = vmatpush1.bf16.msra.mxu0 %v1225
  %2166 = vmatprep.subr.bf16.mxu0 0
  %2167 = vmatpush1.bf16.msra.mxu0 %v1238
  %2168 = vmatprep.subr.bf16.mxu0 0
  %2169 = vmatpush1.bf16.msra.mxu0 %v1251
  %2170 = vmatprep.mubr.bf16.mxu0 %v373
  %2171 = vmatmul.mubr.bf16.gmra.mrb[0].mxu0 %v372
  %v2172 = vpop.f32.mrb[0].mxu0
  %v2173 = vadd.f32 %v310, %v2172
  %v2174 = vpop.f32.mrb[0].mxu0
  %v2175 = vpop.f32.mrb[0].mxu0
  %v2176 = vadd.f32 %v310, %v2175
  %v2177 = vpop.f32.mrb[0].mxu0
  %2178 = vmatprep.mubr.bf16.mxu0 %v375
  %2179 = vmatmul.mubr.bf16.gmra.mrb[0].mxu0 %v374
  %v2180 = vpop.f32.mrb[0].mxu0
  %v2181 = vadd.f32 %v310, %v2180
  %v2182 = vpop.f32.mrb[0].mxu0
  %v2183 = vpop.f32.mrb[0].mxu0
  %v2184 = vadd.f32 %v310, %v2183
  %v2185 = vpop.f32.mrb[0].mxu0
  %2186 = vmatprep.mubr.bf16.mxu0 %v377
  %2187 = vmatmul.mubr.bf16.gmra.mrb[0].mxu0 %v376
  %v2188 = vpop.f32.mrb[0].mxu0
  %v2189 = vadd.f32 %v310, %v2188
  %v2190 = vpop.f32.mrb[0].mxu0
  %v2191 = vpop.f32.mrb[0].mxu0
  %v2192 = vadd.f32 %v310, %v2191
  %v2193 = vpop.f32.mrb[0].mxu0
  %2194 = vmatprep.mubr.bf16.mxu0 %v379
  %2195 = vmatmul.mubr.bf16.gmra.mrb[0].mxu0 %v378
  %v2196 = vpop.f32.mrb[0].mxu0
  %v2197 = vadd.f32 %v310, %v2196
  %v2198 = vpop.f32.mrb[0].mxu0
  %v2199 = vpop.f32.mrb[0].mxu0
  %v2200 = vadd.f32 %v310, %v2199
  %v2201 = vpop.f32.mrb[0].mxu0
  %2202 = vmatprep.mubr.bf16.mxu0 %v381
  %2203 = vmatmul.mubr.bf16.gmra.mrb[0].mxu0 %v380
  %v2204 = vpop.f32.mrb[0].mxu0
  %v2205 = vadd.f32 %v310, %v2204
  %v2206 = vpop.f32.mrb[0].mxu0
  %v2207 = vpop.f32.mrb[0].mxu0
  %v2208 = vadd.f32 %v310, %v2207
  %v2209 = vpop.f32.mrb[0].mxu0
  %2210 = vmatprep.mubr.bf16.mxu0 %v383
  %2211 = vmatmul.mubr.bf16.gmra.mrb[0].mxu0 %v382
  %v2212 = vpop.f32.mrb[0].mxu0
  %v2213 = vadd.f32 %v310, %v2212
  %v2214 = vpop.f32.mrb[0].mxu0
  %v2215 = vpop.f32.mrb[0].mxu0
  %v2216 = vadd.f32 %v310, %v2215
  %v2217 = vpop.f32.mrb[0].mxu0
  %2218 = vmatprep.mubr.bf16.mxu0 %v385
  %2219 = vmatmul.mubr.bf16.gmra.mrb[0].mxu0 %v384
  %v2220 = vpop.f32.mrb[0].mxu0
  %v2221 = vadd.f32 %v310, %v2220
  %v2222 = vpop.f32.mrb[0].mxu0
  %v2223 = vpop.f32.mrb[0].mxu0
  %v2224 = vadd.f32 %v310, %v2223
  %v2225 = vpop.f32.mrb[0].mxu0
  %2226 = vmatprep.mubr.bf16.mxu0 %v387
  %2227 = vmatmul.mubr.bf16.gmra.mrb[0].mxu0 %v386
  %v2228 = vpop.f32.mrb[0].mxu0
  %v2229 = vadd.f32 %v310, %v2228
  %v2230 = vpop.f32.mrb[0].mxu0
  %v2231 = vpop.f32.mrb[0].mxu0
  %v2232 = vadd.f32 %v310, %v2231
  %v2233 = vpop.f32.mrb[0].mxu0
  %2234 = vdwg.mxu0
  %v2235 = vmax.f32 %v1495, 0.0
  %v2236 = vmax.f32 %v1497, 0.0
  %v2237 = vmax.f32 %v1608, 0.0
  %v2238 = vmax.f32 %v1610, 0.0
  %v2239 = vmax.f32 %v1721, 0.0
  %v2240 = vmax.f32 %v1723, 0.0
  %v2241 = vmax.f32 %v1834, 0.0
  %v2242 = vmax.f32 %v1836, 0.0
  %v2243 = vmax.f32 %v1947, 0.0
  %v2244 = vmax.f32 %v1949, 0.0
  %v2245 = vmax.f32 %v2060, 0.0
  %v2246 = vmax.f32 %v2062, 0.0
  %v2247 = vmax.f32 %v2173, 0.0
  %v2248 = vmax.f32 %v1499, 0.0
  %v2249 = vmax.f32 %v1501, 0.0
  %v2250 = vmax.f32 %v1612, 0.0
  %v2251 = vmax.f32 %v1614, 0.0
  %v2252 = vmax.f32 %v1725, 0.0
  %v2253 = vmax.f32 %v1727, 0.0
  %v2254 = vmax.f32 %v1838, 0.0
  %v2255 = vmax.f32 %v1840, 0.0
  %v2256 = vmax.f32 %v1951, 0.0
  %v2257 = vmax.f32 %v1953, 0.0
  %v2258 = vmax.f32 %v2064, 0.0
  %v2259 = vmax.f32 %v2066, 0.0
  %v2260 = vmax.f32 %v2176, 0.0
  %v2261 = vmax.f32 %v1505, 0.0
  %v2262 = vmax.f32 %v1507, 0.0
  %v2263 = vmax.f32 %v1618, 0.0
  %v2264 = vmax.f32 %v1620, 0.0
  %v2265 = vmax.f32 %v1731, 0.0
  %v2266 = vmax.f32 %v1733, 0.0
  %v2267 = vmax.f32 %v1844, 0.0
  %v2268 = vmax.f32 %v1846, 0.0
  %v2269 = vmax.f32 %v1957, 0.0
  %v2270 = vmax.f32 %v1959, 0.0
  %v2271 = vmax.f32 %v2070, 0.0
  %v2272 = vmax.f32 %v2072, 0.0
  %v2273 = vmax.f32 %v2181, 0.0
  %v2274 = vmax.f32 %v1509, 0.0
  %v2275 = vmax.f32 %v1511, 0.0
  %v2276 = vmax.f32 %v1622, 0.0
  %v2277 = vmax.f32 %v1624, 0.0
  %v2278 = vmax.f32 %v1735, 0.0
  %v2279 = vmax.f32 %v1737, 0.0
  %v2280 = vmax.f32 %v1848, 0.0
  %v2281 = vmax.f32 %v1850, 0.0
  %v2282 = vmax.f32 %v1961, 0.0
  %v2283 = vmax.f32 %v1963, 0.0
  %v2284 = vmax.f32 %v2074, 0.0
  %v2285 = vmax.f32 %v2076, 0.0
  %v2286 = vmax.f32 %v2184, 0.0
  %v2287 = vmax.f32 %v1515, 0.0
  %v2288 = vmax.f32 %v1517, 0.0
  %v2289 = vmax.f32 %v1628, 0.0
  %v2290 = vmax.f32 %v1630, 0.0
  %v2291 = vmax.f32 %v1741, 0.0
  %v2292 = vmax.f32 %v1743, 0.0
  %v2293 = vmax.f32 %v1854, 0.0
  %v2294 = vmax.f32 %v1856, 0.0
  %v2295 = vmax.f32 %v1967, 0.0
  %v2296 = vmax.f32 %v1969, 0.0
  %v2297 = vmax.f32 %v2080, 0.0
  %v2298 = vmax.f32 %v2082, 0.0
  %v2299 = vmax.f32 %v2189, 0.0
  %v2300 = vmax.f32 %v1519, 0.0
  %v2301 = vmax.f32 %v1521, 0.0
  %v2302 = vmax.f32 %v1632, 0.0
  %v2303 = vmax.f32 %v1634, 0.0
  %v2304 = vmax.f32 %v1745, 0.0
  %v2305 = vmax.f32 %v1747, 0.0
  %v2306 = vmax.f32 %v1858, 0.0
  %v2307 = vmax.f32 %v1860, 0.0
  %v2308 = vmax.f32 %v1971, 0.0
  %v2309 = vmax.f32 %v1973, 0.0
  %v2310 = vmax.f32 %v2084, 0.0
  %v2311 = vmax.f32 %v2086, 0.0
  %v2312 = vmax.f32 %v2192, 0.0
  %v2313 = vmax.f32 %v1525, 0.0
  %v2314 = vmax.f32 %v1527, 0.0
  %v2315 = vmax.f32 %v1638, 0.0
  %v2316 = vmax.f32 %v1640, 0.0
  %v2317 = vmax.f32 %v1751, 0.0
  %v2318 = vmax.f32 %v1753, 0.0
  %v2319 = vmax.f32 %v1864, 0.0
  %v2320 = vmax.f32 %v1866, 0.0
  %v2321 = vmax.f32 %v1977, 0.0
  %v2322 = vmax.f32 %v1979, 0.0
  %v2323 = vmax.f32 %v2090, 0.0
  %v2324 = vmax.f32 %v2092, 0.0
  %v2325 = vmax.f32 %v2197, 0.0
  %v2326 = vmax.f32 %v1529, 0.0
  %v2327 = vmax.f32 %v1531, 0.0
  %v2328 = vmax.f32 %v1642, 0.0
  %v2329 = vmax.f32 %v1644, 0.0
  %v2330 = vmax.f32 %v1755, 0.0
  %v2331 = vmax.f32 %v1757, 0.0
  %v2332 = vmax.f32 %v1868, 0.0
  %v2333 = vmax.f32 %v1870, 0.0
  %v2334 = vmax.f32 %v1981, 0.0
  %v2335 = vmax.f32 %v1983, 0.0
  %v2336 = vmax.f32 %v2094, 0.0
  %v2337 = vmax.f32 %v2096, 0.0
  %v2338 = vmax.f32 %v2200, 0.0
  %v2339 = vmax.f32 %v1535, 0.0
  %v2340 = vmax.f32 %v1537, 0.0
  %v2341 = vmax.f32 %v1648, 0.0
  %v2342 = vmax.f32 %v1650, 0.0
  %v2343 = vmax.f32 %v1761, 0.0
  %v2344 = vmax.f32 %v1763, 0.0
  %v2345 = vmax.f32 %v1874, 0.0
  %v2346 = vmax.f32 %v1876, 0.0
  %v2347 = vmax.f32 %v1987, 0.0
  %v2348 = vmax.f32 %v1989, 0.0
  %v2349 = vmax.f32 %v2100, 0.0
  %v2350 = vmax.f32 %v2102, 0.0
  %v2351 = vmax.f32 %v2205, 0.0
  %v2352 = vmax.f32 %v1539, 0.0
  %v2353 = vmax.f32 %v1541, 0.0
  %v2354 = vmax.f32 %v1652, 0.0
  %v2355 = vmax.f32 %v1654, 0.0
  %v2356 = vmax.f32 %v1765, 0.0
  %v2357 = vmax.f32 %v1767, 0.0
  %v2358 = vmax.f32 %v1878, 0.0
  %v2359 = vmax.f32 %v1880, 0.0
  %v2360 = vmax.f32 %v1991, 0.0
  %v2361 = vmax.f32 %v1993, 0.0
  %v2362 = vmax.f32 %v2104, 0.0
  %v2363 = vmax.f32 %v2106, 0.0
  %v2364 = vmax.f32 %v2208, 0.0
  %v2365 = vmax.f32 %v1545, 0.0
  %v2366 = vmax.f32 %v1547, 0.0
  %v2367 = vmax.f32 %v1658, 0.0
  %v2368 = vmax.f32 %v1660, 0.0
  %v2369 = vmax.f32 %v1771, 0.0
  %v2370 = vmax.f32 %v1773, 0.0
  %v2371 = vmax.f32 %v1884, 0.0
  %v2372 = vmax.f32 %v1886, 0.0
  %v2373 = vmax.f32 %v1997, 0.0
  %v2374 = vmax.f32 %v1999, 0.0
  %v2375 = vmax.f32 %v2110, 0.0
  %v2376 = vmax.f32 %v2112, 0.0
  %v2377 = vmax.f32 %v2213, 0.0
  %v2378 = vmax.f32 %v1549, 0.0
  %v2379 = vmax.f32 %v1551, 0.0
  %v2380 = vmax.f32 %v1662, 0.0
  %v2381 = vmax.f32 %v1664, 0.0
  %v2382 = vmax.f32 %v1775, 0.0
  %v2383 = vmax.f32 %v1777, 0.0
  %v2384 = vmax.f32 %v1888, 0.0
  %v2385 = vmax.f32 %v1890, 0.0
  %v2386 = vmax.f32 %v2001, 0.0
  %v2387 = vmax.f32 %v2003, 0.0
  %v2388 = vmax.f32 %v2114, 0.0
  %v2389 = vmax.f32 %v2116, 0.0
  %v2390 = vmax.f32 %v2216, 0.0
  %v2391 = vmax.f32 %v1555, 0.0
  %v2392 = vmax.f32 %v1557, 0.0
  %v2393 = vmax.f32 %v1668, 0.0
  %v2394 = vmax.f32 %v1670, 0.0
  %v2395 = vmax.f32 %v1781, 0.0
  %v2396 = vmax.f32 %v1783, 0.0
  %v2397 = vmax.f32 %v1894, 0.0
  %v2398 = vmax.f32 %v1896, 0.0
  %v2399 = vmax.f32 %v2007, 0.0
  %v2400 = vmax.f32 %v2009, 0.0
  %v2401 = vmax.f32 %v2120, 0.0
  %v2402 = vmax.f32 %v2122, 0.0
  %v2403 = vmax.f32 %v2221, 0.0
  %v2404 = vmax.f32 %v1559, 0.0
  %v2405 = vmax.f32 %v1561, 0.0
  %v2406 = vmax.f32 %v1672, 0.0
  %v2407 = vmax.f32 %v1674, 0.0
  %v2408 = vmax.f32 %v1785, 0.0
  %v2409 = vmax.f32 %v1787, 0.0
  %v2410 = vmax.f32 %v1898, 0.0
  %v2411 = vmax.f32 %v1900, 0.0
  %v2412 = vmax.f32 %v2011, 0.0
  %v2413 = vmax.f32 %v2013, 0.0
  %v2414 = vmax.f32 %v2124, 0.0
  %v2415 = vmax.f32 %v2126, 0.0
  %v2416 = vmax.f32 %v2224, 0.0
  %v2417 = vmax.f32 %v1565, 0.0
  %v2418 = vmax.f32 %v1567, 0.0
  %v2419 = vmax.f32 %v1678, 0.0
  %v2420 = vmax.f32 %v1680, 0.0
  %v2421 = vmax.f32 %v1791, 0.0
  %v2422 = vmax.f32 %v1793, 0.0
  %v2423 = vmax.f32 %v1904, 0.0
  %v2424 = vmax.f32 %v1906, 0.0
  %v2425 = vmax.f32 %v2017, 0.0
  %v2426 = vmax.f32 %v2019, 0.0
  %v2427 = vmax.f32 %v2130, 0.0
  %v2428 = vmax.f32 %v2132, 0.0
  %v2429 = vmax.f32 %v2229, 0.0
  %v2430 = vmax.f32 %v1569, 0.0
  %v2431 = vmax.f32 %v1571, 0.0
  %v2432 = vmax.f32 %v1682, 0.0
  %v2433 = vmax.f32 %v1684, 0.0
  %v2434 = vmax.f32 %v1795, 0.0
  %v2435 = vmax.f32 %v1797, 0.0
  %v2436 = vmax.f32 %v1908, 0.0
  %v2437 = vmax.f32 %v1910, 0.0
  %v2438 = vmax.f32 %v2021, 0.0
  %v2439 = vmax.f32 %v2023, 0.0
  %v2440 = vmax.f32 %v2134, 0.0
  %v2441 = vmax.f32 %v2136, 0.0
  %v2442 = vmax.f32 %v2232, 0.0
  %v2443 = vpack.c.bf16 %v2248, %v2235
  %v2444 = vpack.c.bf16 %v2249, %v2236
  %v2445 = vpack.c.bf16 %v2250, %v2237
  %v2446 = vpack.c.bf16 %v2251, %v2238
  %v2447 = vpack.c.bf16 %v2252, %v2239
  %v2448 = vpack.c.bf16 %v2253, %v2240
  %v2449 = vpack.c.bf16 %v2254, %v2241
  %v2450 = vpack.c.bf16 %v2255, %v2242
  %v2451 = vpack.c.bf16 %v2256, %v2243
  %v2452 = vpack.c.bf16 %v2257, %v2244
  %v2453 = vpack.c.bf16 %v2258, %v2245
  %v2454 = vpack.c.bf16 %v2259, %v2246
  %v2455 = vpack.c.bf16 %v2260, %v2247
  %v2456 = vpack.c.bf16 %v2274, %v2261
  %v2457 = vpack.c.bf16 %v2275, %v2262
  %v2458 = vpack.c.bf16 %v2276, %v2263
  %v2459 = vpack.c.bf16 %v2277, %v2264
  %v2460 = vpack.c.bf16 %v2278, %v2265
  %v2461 = vpack.c.bf16 %v2279, %v2266
  %v2462 = vpack.c.bf16 %v2280, %v2267
  %v2463 = vpack.c.bf16 %v2281, %v2268
  %v2464 = vpack.c.bf16 %v2282, %v2269
  %v2465 = vpack.c.bf16 %v2283, %v2270
  %v2466 = vpack.c.bf16 %v2284, %v2271
  %v2467 = vpack.c.bf16 %v2285, %v2272
  %v2468 = vpack.c.bf16 %v2286, %v2273
  %v2469 = vpack.c.bf16 %v2300, %v2287
  %v2470 = vpack.c.bf16 %v2301, %v2288
  %v2471 = vpack.c.bf16 %v2302, %v2289
  %v2472 = vpack.c.bf16 %v2303, %v2290
  %v2473 = vpack.c.bf16 %v2304, %v2291
  %v2474 = vpack.c.bf16 %v2305, %v2292
  %v2475 = vpack.c.bf16 %v2306, %v2293
  %v2476 = vpack.c.bf16 %v2307, %v2294
  %v2477 = vpack.c.bf16 %v2308, %v2295
  %v2478 = vpack.c.bf16 %v2309, %v2296
  %v2479 = vpack.c.bf16 %v2310, %v2297
  %v2480 = vpack.c.bf16 %v2311, %v2298
  %v2481 = vpack.c.bf16 %v2312, %v2299
  %v2482 = vpack.c.bf16 %v2326, %v2313
  %v2483 = vpack.c.bf16 %v2327, %v2314
  %v2484 = vpack.c.bf16 %v2328, %v2315
  %v2485 = vpack.c.bf16 %v2329, %v2316
  %v2486 = vpack.c.bf16 %v2330, %v2317
  %v2487 = vpack.c.bf16 %v2331, %v2318
  %v2488 = vpack.c.bf16 %v2332, %v2319
  %v2489 = vpack.c.bf16 %v2333, %v2320
  %v2490 = vpack.c.bf16 %v2334, %v2321
  %v2491 = vpack.c.bf16 %v2335, %v2322
  %v2492 = vpack.c.bf16 %v2336, %v2323
  %v2493 = vpack.c.bf16 %v2337, %v2324
  %v2494 = vpack.c.bf16 %v2338, %v2325
  %v2495 = vpack.c.bf16 %v2352, %v2339
  %v2496 = vpack.c.bf16 %v2353, %v2340
  %v2497 = vpack.c.bf16 %v2354, %v2341
  %v2498 = vpack.c.bf16 %v2355, %v2342
  %v2499 = vpack.c.bf16 %v2356, %v2343
  %v2500 = vpack.c.bf16 %v2357, %v2344
  %v2501 = vpack.c.bf16 %v2358, %v2345
  %v2502 = vpack.c.bf16 %v2359, %v2346
  %v2503 = vpack.c.bf16 %v2360, %v2347
  %v2504 = vpack.c.bf16 %v2361, %v2348
  %v2505 = vpack.c.bf16 %v2362, %v2349
  %v2506 = vpack.c.bf16 %v2363, %v2350
  %v2507 = vpack.c.bf16 %v2364, %v2351
  %v2508 = vpack.c.bf16 %v2378, %v2365
  %v2509 = vpack.c.bf16 %v2379, %v2366
  %v2510 = vpack.c.bf16 %v2380, %v2367
  %v2511 = vpack.c.bf16 %v2381, %v2368
  %v2512 = vpack.c.bf16 %v2382, %v2369
  %v2513 = vpack.c.bf16 %v2383, %v2370
  %v2514 = vpack.c.bf16 %v2384, %v2371
  %v2515 = vpack.c.bf16 %v2385, %v2372
  %v2516 = vpack.c.bf16 %v2386, %v2373
  %v2517 = vpack.c.bf16 %v2387, %v2374
  %v2518 = vpack.c.bf16 %v2388, %v2375
  %v2519 = vpack.c.bf16 %v2389, %v2376
  %v2520 = vpack.c.bf16 %v2390, %v2377
  %v2521 = vpack.c.bf16 %v2404, %v2391
  %v2522 = vpack.c.bf16 %v2405, %v2392
  %v2523 = vpack.c.bf16 %v2406, %v2393
  %v2524 = vpack.c.bf16 %v2407, %v2394
  %v2525 = vpack.c.bf16 %v2408, %v2395
  %v2526 = vpack.c.bf16 %v2409, %v2396
  %v2527 = vpack.c.bf16 %v2410, %v2397
  %v2528 = vpack.c.bf16 %v2411, %v2398
  %v2529 = vpack.c.bf16 %v2412, %v2399
  %v2530 = vpack.c.bf16 %v2413, %v2400
  %v2531 = vpack.c.bf16 %v2414, %v2401
  %v2532 = vpack.c.bf16 %v2415, %v2402
  %v2533 = vpack.c.bf16 %v2416, %v2403
  %v2534 = vpack.c.bf16 %v2430, %v2417
  %v2535 = vpack.c.bf16 %v2431, %v2418
  %v2536 = vpack.c.bf16 %v2432, %v2419
  %v2537 = vpack.c.bf16 %v2433, %v2420
  %v2538 = vpack.c.bf16 %v2434, %v2421
  %v2539 = vpack.c.bf16 %v2435, %v2422
  %v2540 = vpack.c.bf16 %v2436, %v2423
  %v2541 = vpack.c.bf16 %v2437, %v2424
  %v2542 = vpack.c.bf16 %v2438, %v2425
  %v2543 = vpack.c.bf16 %v2439, %v2426
  %v2544 = vpack.c.bf16 %v2440, %v2427
  %v2545 = vpack.c.bf16 %v2441, %v2428
  %v2546 = vpack.c.bf16 %v2442, %v2429
  %v2651 = vunpack.c.l.b16 %v2443
  %v2652 = vunpack.c.l.b16 %v2444
  %v2653 = vunpack.c.l.b16 %v2445
  %v2654 = vunpack.c.l.b16 %v2446
  %v2655 = vunpack.c.l.b16 %v2447
  %v2656 = vunpack.c.l.b16 %v2448
  %v2657 = vunpack.c.l.b16 %v2449
  %v2658 = vunpack.c.l.b16 %v2450
  %v2659 = vunpack.c.l.b16 %v2451
  %v2660 = vunpack.c.l.b16 %v2452
  %v2661 = vunpack.c.l.b16 %v2453
  %v2662 = vunpack.c.l.b16 %v2454
  %v2663 = vunpack.c.l.b16 %v2455
  %v2664 = vunpack.c.h.b16 %v2443
  %v2665 = vunpack.c.h.b16 %v2444
  %v2666 = vunpack.c.h.b16 %v2445
  %v2667 = vunpack.c.h.b16 %v2446
  %v2668 = vunpack.c.h.b16 %v2447
  %v2669 = vunpack.c.h.b16 %v2448
  %v2670 = vunpack.c.h.b16 %v2449
  %v2671 = vunpack.c.h.b16 %v2450
  %v2672 = vunpack.c.h.b16 %v2451
  %v2673 = vunpack.c.h.b16 %v2452
  %v2674 = vunpack.c.h.b16 %v2453
  %v2675 = vunpack.c.h.b16 %v2454
  %v2676 = vunpack.c.h.b16 %v2455
  %v2677 = vunpack.c.l.b16 %v2456
  %v2678 = vunpack.c.l.b16 %v2457
  %v2679 = vunpack.c.l.b16 %v2458
  %v2680 = vunpack.c.l.b16 %v2459
  %v2681 = vunpack.c.l.b16 %v2460
  %v2682 = vunpack.c.l.b16 %v2461
  %v2683 = vunpack.c.l.b16 %v2462
  %v2684 = vunpack.c.l.b16 %v2463
  %v2685 = vunpack.c.l.b16 %v2464
  %v2686 = vunpack.c.l.b16 %v2465
  %v2687 = vunpack.c.l.b16 %v2466
  %v2688 = vunpack.c.l.b16 %v2467
  %v2689 = vunpack.c.l.b16 %v2468
  %v2690 = vunpack.c.h.b16 %v2456
  %v2691 = vunpack.c.h.b16 %v2457
  %v2692 = vunpack.c.h.b16 %v2458
  %v2693 = vunpack.c.h.b16 %v2459
  %v2694 = vunpack.c.h.b16 %v2460
  %v2695 = vunpack.c.h.b16 %v2461
  %v2696 = vunpack.c.h.b16 %v2462
  %v2697 = vunpack.c.h.b16 %v2463
  %v2698 = vunpack.c.h.b16 %v2464
  %v2699 = vunpack.c.h.b16 %v2465
  %v2700 = vunpack.c.h.b16 %v2466
  %v2701 = vunpack.c.h.b16 %v2467
  %v2702 = vunpack.c.h.b16 %v2468
  %v2703 = vunpack.c.l.b16 %v2469
  %v2704 = vunpack.c.l.b16 %v2470
  %v2705 = vunpack.c.l.b16 %v2471
  %v2706 = vunpack.c.l.b16 %v2472
  %v2707 = vunpack.c.l.b16 %v2473
  %v2708 = vunpack.c.l.b16 %v2474
  %v2709 = vunpack.c.l.b16 %v2475
  %v2710 = vunpack.c.l.b16 %v2476
  %v2711 = vunpack.c.l.b16 %v2477
  %v2712 = vunpack.c.l.b16 %v2478
  %v2713 = vunpack.c.l.b16 %v2479
  %v2714 = vunpack.c.l.b16 %v2480
  %v2715 = vunpack.c.l.b16 %v2481
  %v2716 = vunpack.c.h.b16 %v2469
  %v2717 = vunpack.c.h.b16 %v2470
  %v2718 = vunpack.c.h.b16 %v2471
  %v2719 = vunpack.c.h.b16 %v2472
  %v2720 = vunpack.c.h.b16 %v2473
  %v2721 = vunpack.c.h.b16 %v2474
  %v2722 = vunpack.c.h.b16 %v2475
  %v2723 = vunpack.c.h.b16 %v2476
  %v2724 = vunpack.c.h.b16 %v2477
  %v2725 = vunpack.c.h.b16 %v2478
  %v2726 = vunpack.c.h.b16 %v2479
  %v2727 = vunpack.c.h.b16 %v2480
  %v2728 = vunpack.c.h.b16 %v2481
  %v2729 = vunpack.c.l.b16 %v2482
  %v2730 = vunpack.c.l.b16 %v2483
  %v2731 = vunpack.c.l.b16 %v2484
  %v2732 = vunpack.c.l.b16 %v2485
  %v2733 = vunpack.c.l.b16 %v2486
  %v2734 = vunpack.c.l.b16 %v2487
  %v2735 = vunpack.c.l.b16 %v2488
  %v2736 = vunpack.c.l.b16 %v2489
  %v2737 = vunpack.c.l.b16 %v2490
  %v2738 = vunpack.c.l.b16 %v2491
  %v2739 = vunpack.c.l.b16 %v2492
  %v2740 = vunpack.c.l.b16 %v2493
  %v2741 = vunpack.c.l.b16 %v2494
  %v2742 = vunpack.c.h.b16 %v2482
  %v2743 = vunpack.c.h.b16 %v2483
  %v2744 = vunpack.c.h.b16 %v2484
  %v2745 = vunpack.c.h.b16 %v2485
  %v2746 = vunpack.c.h.b16 %v2486
  %v2747 = vunpack.c.h.b16 %v2487
  %v2748 = vunpack.c.h.b16 %v2488
  %v2749 = vunpack.c.h.b16 %v2489
  %v2750 = vunpack.c.h.b16 %v2490
  %v2751 = vunpack.c.h.b16 %v2491
  %v2752 = vunpack.c.h.b16 %v2492
  %v2753 = vunpack.c.h.b16 %v2493
  %v2754 = vunpack.c.h.b16 %v2494
  %v2755 = vunpack.c.l.b16 %v2495
  %v2756 = vunpack.c.l.b16 %v2496
  %v2757 = vunpack.c.l.b16 %v2497
  %v2758 = vunpack.c.l.b16 %v2498
  %v2759 = vunpack.c.l.b16 %v2499
  %v2760 = vunpack.c.l.b16 %v2500
  %v2761 = vunpack.c.l.b16 %v2501
  %v2762 = vunpack.c.l.b16 %v2502
  %v2763 = vunpack.c.l.b16 %v2503
  %v2764 = vunpack.c.l.b16 %v2504
  %v2765 = vunpack.c.l.b16 %v2505
  %v2766 = vunpack.c.l.b16 %v2506
  %v2767 = vunpack.c.l.b16 %v2507
  %v2768 = vunpack.c.h.b16 %v2495
  %v2769 = vunpack.c.h.b16 %v2496
  %v2770 = vunpack.c.h.b16 %v2497
  %v2771 = vunpack.c.h.b16 %v2498
  %v2772 = vunpack.c.h.b16 %v2499
  %v2773 = vunpack.c.h.b16 %v2500
  %v2774 = vunpack.c.h.b16 %v2501
  %v2775 = vunpack.c.h.b16 %v2502
  %v2776 = vunpack.c.h.b16 %v2503
  %v2777 = vunpack.c.h.b16 %v2504
  %v2778 = vunpack.c.h.b16 %v2505
  %v2779 = vunpack.c.h.b16 %v2506
  %v2780 = vunpack.c.h.b16 %v2507
  %v2781 = vunpack.c.l.b16 %v2508
  %v2782 = vunpack.c.l.b16 %v2509
  %v2783 = vunpack.c.l.b16 %v2510
  %v2784 = vunpack.c.l.b16 %v2511
  %v2785 = vunpack.c.l.b16 %v2512
  %v2786 = vunpack.c.l.b16 %v2513
  %v2787 = vunpack.c.l.b16 %v2514
  %v2788 = vunpack.c.l.b16 %v2515
  %v2789 = vunpack.c.l.b16 %v2516
  %v2790 = vunpack.c.l.b16 %v2517
  %v2791 = vunpack.c.l.b16 %v2518
  %v2792 = vunpack.c.l.b16 %v2519
  %v2793 = vunpack.c.l.b16 %v2520
  %v2794 = vunpack.c.h.b16 %v2508
  %v2795 = vunpack.c.h.b16 %v2509
  %v2796 = vunpack.c.h.b16 %v2510
  %v2797 = vunpack.c.h.b16 %v2511
  %v2798 = vunpack.c.h.b16 %v2512
  %v2799 = vunpack.c.h.b16 %v2513
  %v2800 = vunpack.c.h.b16 %v2514
  %v2801 = vunpack.c.h.b16 %v2515
  %v2802 = vunpack.c.h.b16 %v2516
  %v2803 = vunpack.c.h.b16 %v2517
  %v2804 = vunpack.c.h.b16 %v2518
  %v2805 = vunpack.c.h.b16 %v2519
  %v2806 = vunpack.c.h.b16 %v2520
  %v2807 = vunpack.c.l.b16 %v2521
  %v2808 = vunpack.c.l.b16 %v2522
  %v2809 = vunpack.c.l.b16 %v2523
  %v2810 = vunpack.c.l.b16 %v2524
  %v2811 = vunpack.c.l.b16 %v2525
  %v2812 = vunpack.c.l.b16 %v2526
  %v2813 = vunpack.c.l.b16 %v2527
  %v2814 = vunpack.c.l.b16 %v2528
  %v2815 = vunpack.c.l.b16 %v2529
  %v2816 = vunpack.c.l.b16 %v2530
  %v2817 = vunpack.c.l.b16 %v2531
  %v2818 = vunpack.c.l.b16 %v2532
  %v2819 = vunpack.c.l.b16 %v2533
  %v2820 = vunpack.c.h.b16 %v2521
  %v2821 = vunpack.c.h.b16 %v2522
  %v2822 = vunpack.c.h.b16 %v2523
  %v2823 = vunpack.c.h.b16 %v2524
  %v2824 = vunpack.c.h.b16 %v2525
  %v2825 = vunpack.c.h.b16 %v2526
  %v2826 = vunpack.c.h.b16 %v2527
  %v2827 = vunpack.c.h.b16 %v2528
  %v2828 = vunpack.c.h.b16 %v2529
  %v2829 = vunpack.c.h.b16 %v2530
  %v2830 = vunpack.c.h.b16 %v2531
  %v2831 = vunpack.c.h.b16 %v2532
  %v2832 = vunpack.c.h.b16 %v2533
  %v2833 = vunpack.c.l.b16 %v2534
  %v2834 = vunpack.c.l.b16 %v2535
  %v2835 = vunpack.c.l.b16 %v2536
  %v2836 = vunpack.c.l.b16 %v2537
  %v2837 = vunpack.c.l.b16 %v2538
  %v2838 = vunpack.c.l.b16 %v2539
  %v2839 = vunpack.c.l.b16 %v2540
  %v2840 = vunpack.c.l.b16 %v2541
  %v2841 = vunpack.c.l.b16 %v2542
  %v2842 = vunpack.c.l.b16 %v2543
  %v2843 = vunpack.c.l.b16 %v2544
  %v2844 = vunpack.c.l.b16 %v2545
  %v2845 = vunpack.c.l.b16 %v2546
  %v2846 = vunpack.c.h.b16 %v2534
  %v2847 = vunpack.c.h.b16 %v2535
  %v2848 = vunpack.c.h.b16 %v2536
  %v2849 = vunpack.c.h.b16 %v2537
  %v2850 = vunpack.c.h.b16 %v2538
  %v2851 = vunpack.c.h.b16 %v2539
  %v2852 = vunpack.c.h.b16 %v2540
  %v2853 = vunpack.c.h.b16 %v2541
  %v2854 = vunpack.c.h.b16 %v2542
  %v2855 = vunpack.c.h.b16 %v2543
  %v2856 = vunpack.c.h.b16 %v2544
  %v2857 = vunpack.c.h.b16 %v2545
  %v2858 = vunpack.c.h.b16 %v2546
  %v2859 = vpack.c.b16 %v2652, %v2651
  %v2860 = vpack.c.b16 %v2654, %v2653
  %v2861 = vpack.c.b16 %v2656, %v2655
  %v2862 = vpack.c.b16 %v2658, %v2657
  %v2863 = vpack.c.b16 %v2660, %v2659
  %v2864 = vpack.c.b16 %v2662, %v2661
  %v2865 = vpack.c.b16 %v2663, %v2663
  %v2866 = vpack.c.b16 %v2665, %v2664
  %v2867 = vpack.c.b16 %v2667, %v2666
  %v2868 = vpack.c.b16 %v2669, %v2668
  %v2869 = vpack.c.b16 %v2671, %v2670
  %v2870 = vpack.c.b16 %v2673, %v2672
  %v2871 = vpack.c.b16 %v2675, %v2674
  %v2872 = vpack.c.b16 %v2676, %v2676
  %v2873 = vpack.c.b16 %v2678, %v2677
  %v2874 = vpack.c.b16 %v2680, %v2679
  %v2875 = vpack.c.b16 %v2682, %v2681
  %v2876 = vpack.c.b16 %v2684, %v2683
  %v2877 = vpack.c.b16 %v2686, %v2685
  %v2878 = vpack.c.b16 %v2688, %v2687
  %v2879 = vpack.c.b16 %v2689, %v2689
  %v2880 = vpack.c.b16 %v2691, %v2690
  %v2881 = vpack.c.b16 %v2693, %v2692
  %v2882 = vpack.c.b16 %v2695, %v2694
  %v2883 = vpack.c.b16 %v2697, %v2696
  %v2884 = vpack.c.b16 %v2699, %v2698
  %v2885 = vpack.c.b16 %v2701, %v2700
  %v2886 = vpack.c.b16 %v2702, %v2702
  %v2887 = vpack.c.b16 %v2704, %v2703
  %v2888 = vpack.c.b16 %v2706, %v2705
  %v2889 = vpack.c.b16 %v2708, %v2707
  %v2890 = vpack.c.b16 %v2710, %v2709
  %v2891 = vpack.c.b16 %v2712, %v2711
  %v2892 = vpack.c.b16 %v2714, %v2713
  %v2893 = vpack.c.b16 %v2715, %v2715
  %v2894 = vpack.c.b16 %v2717, %v2716
  %v2895 = vpack.c.b16 %v2719, %v2718
  %v2896 = vpack.c.b16 %v2721, %v2720
  %v2897 = vpack.c.b16 %v2723, %v2722
  %v2898 = vpack.c.b16 %v2725, %v2724
  %v2899 = vpack.c.b16 %v2727, %v2726
  %v2900 = vpack.c.b16 %v2728, %v2728
  %v2901 = vpack.c.b16 %v2730, %v2729
  %v2902 = vpack.c.b16 %v2732, %v2731
  %v2903 = vpack.c.b16 %v2734, %v2733
  %v2904 = vpack.c.b16 %v2736, %v2735
  %v2905 = vpack.c.b16 %v2738, %v2737
  %v2906 = vpack.c.b16 %v2740, %v2739
  %v2907 = vpack.c.b16 %v2741, %v2741
  %v2908 = vpack.c.b16 %v2743, %v2742
  %v2909 = vpack.c.b16 %v2745, %v2744
  %v2910 = vpack.c.b16 %v2747, %v2746
  %v2911 = vpack.c.b16 %v2749, %v2748
  %v2912 = vpack.c.b16 %v2751, %v2750
  %v2913 = vpack.c.b16 %v2753, %v2752
  %v2914 = vpack.c.b16 %v2754, %v2754
  %v2915 = vpack.c.b16 %v2756, %v2755
  %v2916 = vpack.c.b16 %v2758, %v2757
  %v2917 = vpack.c.b16 %v2760, %v2759
  %v2918 = vpack.c.b16 %v2762, %v2761
  %v2919 = vpack.c.b16 %v2764, %v2763
  %v2920 = vpack.c.b16 %v2766, %v2765
  %v2921 = vpack.c.b16 %v2767, %v2767
  %v2922 = vpack.c.b16 %v2769, %v2768
  %v2923 = vpack.c.b16 %v2771, %v2770
  %v2924 = vpack.c.b16 %v2773, %v2772
  %v2925 = vpack.c.b16 %v2775, %v2774
  %v2926 = vpack.c.b16 %v2777, %v2776
  %v2927 = vpack.c.b16 %v2779, %v2778
  %v2928 = vpack.c.b16 %v2780, %v2780
  %v2929 = vpack.c.b16 %v2782, %v2781
  %v2930 = vpack.c.b16 %v2784, %v2783
  %v2931 = vpack.c.b16 %v2786, %v2785
  %v2932 = vpack.c.b16 %v2788, %v2787
  %v2933 = vpack.c.b16 %v2790, %v2789
  %v2934 = vpack.c.b16 %v2792, %v2791
  %v2935 = vpack.c.b16 %v2793, %v2793
  %v2936 = vpack.c.b16 %v2795, %v2794
  %v2937 = vpack.c.b16 %v2797, %v2796
  %v2938 = vpack.c.b16 %v2799, %v2798
  %v2939 = vpack.c.b16 %v2801, %v2800
  %v2940 = vpack.c.b16 %v2803, %v2802
  %v2941 = vpack.c.b16 %v2805, %v2804
  %v2942 = vpack.c.b16 %v2806, %v2806
  %v2943 = vpack.c.b16 %v2808, %v2807
  %v2944 = vpack.c.b16 %v2810, %v2809
  %v2945 = vpack.c.b16 %v2812, %v2811
  %v2946 = vpack.c.b16 %v2814, %v2813
  %v2947 = vpack.c.b16 %v2816, %v2815
  %v2948 = vpack.c.b16 %v2818, %v2817
  %v2949 = vpack.c.b16 %v2819, %v2819
  %v2950 = vpack.c.b16 %v2821, %v2820
  %v2951 = vpack.c.b16 %v2823, %v2822
  %v2952 = vpack.c.b16 %v2825, %v2824
  %v2953 = vpack.c.b16 %v2827, %v2826
  %v2954 = vpack.c.b16 %v2829, %v2828
  %v2955 = vpack.c.b16 %v2831, %v2830
  %v2956 = vpack.c.b16 %v2832, %v2832
  %v2957 = vpack.c.b16 %v2834, %v2833
  %v2958 = vpack.c.b16 %v2836, %v2835
  %v2959 = vpack.c.b16 %v2838, %v2837
  %v2960 = vpack.c.b16 %v2840, %v2839
  %v2961 = vpack.c.b16 %v2842, %v2841
  %v2962 = vpack.c.b16 %v2844, %v2843
  %v2963 = vpack.c.b16 %v2845, %v2845
  %v2964 = vpack.c.b16 %v2847, %v2846
  %v2965 = vpack.c.b16 %v2849, %v2848
  %v2966 = vpack.c.b16 %v2851, %v2850
  %v2967 = vpack.c.b16 %v2853, %v2852
  %v2968 = vpack.c.b16 %v2855, %v2854
  %v2969 = vpack.c.b16 %v2857, %v2856
  %v2970 = vpack.c.b16 %v2858, %v2858
  %3083 = vst [vmem:[%s3] sm:$0xff] %v2859
  %3084 = vst [vmem:[%s3 + $0x8] sm:$0xff] %v2860
  %3085 = vst [vmem:[%s3 + $0x10] sm:$0xff] %v2861
  %3086 = vst [vmem:[%s3 + $0x18] sm:$0xff] %v2862
  %3087 = vst [vmem:[%s3 + $0x20] sm:$0xff] %v2863
  %3088 = vst [vmem:[%s3 + $0x28] sm:$0xff] %v2864
  %3089 = vst [vmem:[%s3 + $0x30] sm:$0xf] %v2865
  %3090 = vst [vmem:[%s3 + $0x34] sm:$0xff] %v2866
  %3091 = vst [vmem:[%s3 + $0x3c] sm:$0xff] %v2867
  %3092 = vst [vmem:[%s3 + $0x44] sm:$0xff] %v2868
  %3093 = vst [vmem:[%s3 + $0x4c] sm:$0xff] %v2869
  %3094 = vst [vmem:[%s3 + $0x54] sm:$0xff] %v2870
  %3095 = vst [vmem:[%s3 + $0x5c] sm:$0xff] %v2871
  %3096 = vst [vmem:[%s3 + $0x64] sm:$0xf] %v2872
  %3097 = vst [vmem:[%s3 + $0x68] sm:$0xff] %v2873
  %3098 = vst [vmem:[%s3 + $0x70] sm:$0xff] %v2874
  %3099 = vst [vmem:[%s3 + $0x78] sm:$0xff] %v2875
  %3100 = vst [vmem:[%s3 + $0x80] sm:$0xff] %v2876
  %3101 = vst [vmem:[%s3 + $0x88] sm:$0xff] %v2877
  %3102 = vst [vmem:[%s3 + $0x90] sm:$0xff] %v2878
  %3103 = vst [vmem:[%s3 + $0x98] sm:$0xf] %v2879
  %3104 = vst [vmem:[%s3 + $0x9c] sm:$0xff] %v2880
  %3105 = vst [vmem:[%s3 + $0xa4] sm:$0xff] %v2881
  %3106 = vst [vmem:[%s3 + $0xac] sm:$0xff] %v2882
  %3107 = vst [vmem:[%s3 + $0xb4] sm:$0xff] %v2883
  %3108 = vst [vmem:[%s3 + $0xbc] sm:$0xff] %v2884
  %3109 = vst [vmem:[%s3 + $0xc4] sm:$0xff] %v2885
  %3110 = vst [vmem:[%s3 + $0xcc] sm:$0xf] %v2886
  %3111 = vst [vmem:[%s3 + $0xd0] sm:$0xff] %v2887
  %3112 = vst [vmem:[%s3 + $0xd8] sm:$0xff] %v2888
  %3113 = vst [vmem:[%s3 + $0xe0] sm:$0xff] %v2889
  %3114 = vst [vmem:[%s3 + $0xe8] sm:$0xff] %v2890
  %3115 = vst [vmem:[%s3 + $0xf0] sm:$0xff] %v2891
  %3116 = vst [vmem:[%s3 + $0xf8] sm:$0xff] %v2892
  %3117 = vst [vmem:[%s3 + $0x100] sm:$0xf] %v2893
  %3118 = vst [vmem:[%s3 + $0x104] sm:$0xff] %v2894
  %3119 = vst [vmem:[%s3 + $0x10c] sm:$0xff] %v2895
  %3120 = vst [vmem:[%s3 + $0x114] sm:$0xff] %v2896
  %3121 = vst [vmem:[%s3 + $0x11c] sm:$0xff] %v2897
  %3122 = vst [vmem:[%s3 + $0x124] sm:$0xff] %v2898
  %3123 = vst [vmem:[%s3 + $0x12c] sm:$0xff] %v2899
  %3124 = vst [vmem:[%s3 + $0x134] sm:$0xf] %v2900
  %3125 = vst [vmem:[%s3 + $0x138] sm:$0xff] %v2901
  %3126 = vst [vmem:[%s3 + $0x140] sm:$0xff] %v2902
  %3127 = vst [vmem:[%s3 + $0x148] sm:$0xff] %v2903
  %3128 = vst [vmem:[%s3 + $0x150] sm:$0xff] %v2904
  %3129 = vst [vmem:[%s3 + $0x158] sm:$0xff] %v2905
  %3130 = vst [vmem:[%s3 + $0x160] sm:$0xff] %v2906
  %3131 = vst [vmem:[%s3 + $0x168] sm:$0xf] %v2907
  %3132 = vst [vmem:[%s3 + $0x16c] sm:$0xff] %v2908
  %3133 = vst [vmem:[%s3 + $0x174] sm:$0xff] %v2909
  %3134 = vst [vmem:[%s3 + $0x17c] sm:$0xff] %v2910
  %3135 = vst [vmem:[%s3 + $0x184] sm:$0xff] %v2911
  %3136 = vst [vmem:[%s3 + $0x18c] sm:$0xff] %v2912
  %3137 = vst [vmem:[%s3 + $0x194] sm:$0xff] %v2913
  %3138 = vst [vmem:[%s3 + $0x19c] sm:$0xf] %v2914
  %3139 = vst [vmem:[%s3 + $0x1a0] sm:$0xff] %v2915
  %3140 = vst [vmem:[%s3 + $0x1a8] sm:$0xff] %v2916
  %3141 = vst [vmem:[%s3 + $0x1b0] sm:$0xff] %v2917
  %3142 = vst [vmem:[%s3 + $0x1b8] sm:$0xff] %v2918
  %3143 = vst [vmem:[%s3 + $0x1c0] sm:$0xff] %v2919
  %3144 = vst [vmem:[%s3 + $0x1c8] sm:$0xff] %v2920
  %3145 = vst [vmem:[%s3 + $0x1d0] sm:$0xf] %v2921
  %3146 = vst [vmem:[%s3 + $0x1d4] sm:$0xff] %v2922
  %3147 = vst [vmem:[%s3 + $0x1dc] sm:$0xff] %v2923
  %3148 = vst [vmem:[%s3 + $0x1e4] sm:$0xff] %v2924
  %3149 = vst [vmem:[%s3 + $0x1ec] sm:$0xff] %v2925
  %3150 = vst [vmem:[%s3 + $0x1f4] sm:$0xff] %v2926
  %3151 = vst [vmem:[%s3 + $0x1fc] sm:$0xff] %v2927
  %3152 = vst [vmem:[%s3 + $0x204] sm:$0xf] %v2928
  %3153 = vst [vmem:[%s3 + $0x208] sm:$0xff] %v2929
  %3154 = vst [vmem:[%s3 + $0x210] sm:$0xff] %v2930
  %3155 = vst [vmem:[%s3 + $0x218] sm:$0xff] %v2931
  %3156 = vst [vmem:[%s3 + $0x220] sm:$0xff] %v2932
  %3157 = vst [vmem:[%s3 + $0x228] sm:$0xff] %v2933
  %3158 = vst [vmem:[%s3 + $0x230] sm:$0xff] %v2934
  %3159 = vst [vmem:[%s3 + $0x238] sm:$0xf] %v2935
  %3160 = vst [vmem:[%s3 + $0x23c] sm:$0xff] %v2936
  %3161 = vst [vmem:[%s3 + $0x244] sm:$0xff] %v2937
  %3162 = vst [vmem:[%s3 + $0x24c] sm:$0xff] %v2938
  %3163 = vst [vmem:[%s3 + $0x254] sm:$0xff] %v2939
  %3164 = vst [vmem:[%s3 + $0x25c] sm:$0xff] %v2940
  %3165 = vst [vmem:[%s3 + $0x264] sm:$0xff] %v2941
  %3166 = vst [vmem:[%s3 + $0x26c] sm:$0xf] %v2942
  %3167 = vst [vmem:[%s3 + $0x270] sm:$0xff] %v2943
  %3168 = vst [vmem:[%s3 + $0x278] sm:$0xff] %v2944
  %3169 = vst [vmem:[%s3 + $0x280] sm:$0xff] %v2945
  %3170 = vst [vmem:[%s3 + $0x288] sm:$0xff] %v2946
  %3171 = vst [vmem:[%s3 + $0x290] sm:$0xff] %v2947
  %3172 = vst [vmem:[%s3 + $0x298] sm:$0xff] %v2948
  %3173 = vst [vmem:[%s3 + $0x2a0] sm:$0xf] %v2949
  %3174 = vst [vmem:[%s3 + $0x2a4] sm:$0xff] %v2950
  %3175 = vst [vmem:[%s3 + $0x2ac] sm:$0xff] %v2951
  %3176 = vst [vmem:[%s3 + $0x2b4] sm:$0xff] %v2952
  %3177 = vst [vmem:[%s3 + $0x2bc] sm:$0xff] %v2953
  %3178 = vst [vmem:[%s3 + $0x2c4] sm:$0xff] %v2954
  %3179 = vst [vmem:[%s3 + $0x2cc] sm:$0xff] %v2955
  %3180 = vst [vmem:[%s3 + $0x2d4] sm:$0xf] %v2956
  %3181 = vst [vmem:[%s3 + $0x2d8] sm:$0xff] %v2957
  %3182 = vst [vmem:[%s3 + $0x2e0] sm:$0xff] %v2958
  %3183 = vst [vmem:[%s3 + $0x2e8] sm:$0xff] %v2959
  %3184 = vst [vmem:[%s3 + $0x2f0] sm:$0xff] %v2960
  %3185 = vst [vmem:[%s3 + $0x2f8] sm:$0xff] %v2961
  %3186 = vst [vmem:[%s3 + $0x300] sm:$0xff] %v2962
  %3187 = vst [vmem:[%s3 + $0x308] sm:$0xf] %v2963
  %3188 = vst [vmem:[%s3 + $0x30c] sm:$0xff] %v2964
  %3189 = vst [vmem:[%s3 + $0x314] sm:$0xff] %v2965
  %3190 = vst [vmem:[%s3 + $0x31c] sm:$0xff] %v2966
  %3191 = vst [vmem:[%s3 + $0x324] sm:$0xff] %v2967
  %3192 = vst [vmem:[%s3 + $0x32c] sm:$0xff] %v2968
  %3193 = vst [vmem:[%s3 + $0x334] sm:$0xff] %v2969
  %3194 = vst [vmem:[%s3 + $0x33c] sm:$0xf] %v2970
  // Predicated region
  $region14: #{upsampler_forward.1} parent=0 // pred_check
    _
  $region15: #{upsampler_forward.1} parent=0 // pred_check_branch
    %3196 = sbr.rel (0) target = $region17
  $region16: #{upsampler_forward.1} parent=0 // pred_region
    _
  $region17: #{upsampler_forward.1} parent=0 // pred_fallthru
    _
  // Predicated region
  $region18: #{upsampler_forward.1} parent=0 // pred_check
    _
  $region19: #{upsampler_forward.1} parent=0 // pred_check_branch
    %3198 = sbr.rel (0) target = $region21
  $region20: #{upsampler_forward.1} parent=0 // pred_region
    _
  $region21: #{upsampler_forward.1} parent=0 // pred_fallthru
    _

</llo_original>
